<compile_context>
chip_gen: v5e
topology: v5e:2x2
jax: 0.10.0
libtpu: 0.0.40
codegen_flags: <defaults>
</compile_context>

<pallas_src>
import jax
import jax.numpy as jnp
from jax.experimental import pallas as pl
from jax.experimental.pallas import tpu as pltpu

NUM_KEYPOINTS = 21   # self.num_keypoints in the PyTorch module
HIDDEN = 32
SEG = 128            # lane-aligned output segment width


# ----------------------------------------------------------------------------
# Pallas kernel: fused (pool-in-matmul) MLP heads + Rodrigues + flip + rotate
# ----------------------------------------------------------------------------
def _handpose_kernel(sm_ref, hs_ref, w1s_ref, w1h_ref, b1_ref, w2_ref, b2_ref,
                     out_ref):
    # ---- fused first layer (pose + viewpoint hidden, avg-pool folded in) ---
    # sm_ref: [TB, K*H*W] lane-dense; w1s_ref already contains the 1/(H*W)
    # pooling scale and per-keypoint row replication.
    h = jnp.dot(sm_ref[...], w1s_ref[...], preferred_element_type=jnp.float32)
    h = h + jnp.dot(hs_ref[...], w1h_ref[...],
                    preferred_element_type=jnp.float32)
    h = jnp.maximum(h + b1_ref[...], 0.0)                     # [TB, 2*HIDDEN]

    # ---- fused second layer (block-diagonal, 128-lane-aligned segments) ----
    y = jnp.dot(h, w2_ref[...], preferred_element_type=jnp.float32) + b2_ref[...]
    cx = y[:, 0:SEG]                                           # [TB, 128]
    cy = y[:, SEG:2 * SEG]
    cz = y[:, 2 * SEG:3 * SEG]
    ux = y[:, 3 * SEG:3 * SEG + 1]                             # [TB, 1]
    uy = y[:, 3 * SEG + 1:3 * SEG + 2]
    uz = y[:, 3 * SEG + 2:3 * SEG + 3]

    # ---- get_rotation_matrix: Rodrigues axis-angle -> rotation matrix ------
    u2 = ux * ux + uy * uy + uz * uz + 1e-8
    inv = jax.lax.rsqrt(u2)                                    # 1/theta (EUP)
    theta = u2 * inv                                           # sqrt(u2)
    st = jnp.sin(theta)
    ct = jnp.cos(theta)
    oc = 1.0 - ct
    nx, ny, nz = ux * inv, uy * inv, uz * inv

    r00 = ct + nx * nx * oc
    r01 = nx * ny * oc - nz * st
    r02 = nx * nz * oc + ny * st
    r10 = ny * nx * oc + nz * st
    r11 = ct + ny * ny * oc
    r12 = ny * nz * oc - nx * st
    r20 = nz * nx * oc - ny * st
    r21 = nz * ny * oc + nx * st
    r22 = ct + nz * nz * oc

    # ---- flip_right_hand: argmax(hand_sides, 1) == 1 -> mirror z -----------
    # hs[:,1] > hs[:,0] matches argmax(...)==1 incl. tie-breaking (ties -> no flip).
    hs = hs_ref[...]
    cond_right = hs[:, 1:2] > hs[:, 0:1]                       # [TB, 1] bool
    cz = jnp.where(cond_right, -cz, cz)

    # ---- keypoint_coord3d = coords_flip @ rot_matrix (expanded per axis) ---
    out_x = cx * r00 + cy * r10 + cz * r20                     # [TB, 128]
    out_y = cx * r01 + cy * r11 + cz * r21
    out_z = cx * r02 + cy * r12 + cz * r22

    # Rotation entries go into the 4th 128-aligned segment (lanes 0..8 + pad).
    tb = out_x.shape[0]
    r_seg = jnp.concatenate(
        [r00, r01, r02, r10, r11, r12, r20, r21, r22,
         jnp.zeros((tb, SEG - 9), jnp.float32)], axis=-1)      # [TB, 128]

    # Single lane-dense [TB, 512] store (all segments 128-aligned, unmasked).
    out_ref[...] = jnp.concatenate([out_x, out_y, out_z, r_seg], axis=-1)


# ----------------------------------------------------------------------------
# One-time parameter packing (wrapper-side, outside the kernel)
# ----------------------------------------------------------------------------
def pack_params(params, hw):
    """Pack per-head weights into fused, lane-aligned matmul operands."""
    K, HID = NUM_KEYPOINTS, HIDDEN
    # First layer: columns = [pose hidden (HID) | view hidden (HID)].
    w1_s = jnp.concatenate([params["w1p_s"], params["w1v_s"]], axis=1)  # [K, 2H]
    # Fold the average pool: sm_flat row index = k*HW + s, so replicate each
    # keypoint row HW times and pre-scale by 1/HW.
    w1_sm = jnp.repeat(w1_s, hw, axis=0) / float(hw)                    # [K*HW, 2H]
    w1_hs = jnp.concatenate([params["w1p_h"], params["w1v_h"]], axis=1)  # [2, 2H]
    b1 = jnp.concatenate([params["b1p"], params["b1v"]], axis=1)         # [1, 2H]

    # Second layer: block-diagonal [2H, 4*SEG] with 128-aligned segments:
    #   rows 0:H   -> cx (0:K), cy (SEG:SEG+K), cz (2SEG:2SEG+K)
    #   rows H:2H  -> rotation params (3SEG:3SEG+3)
    w2 = jnp.zeros((2 * HID, 4 * SEG), jnp.float32)
    w2 = w2.at[0:HID, 0:K].set(params["w2px"])
    w2 = w2.at[0:HID, SEG:SEG + K].set(params["w2py"])
    w2 = w2.at[0:HID, 2 * SEG:2 * SEG + K].set(params["w2pz"])
    w2 = w2.at[HID:2 * HID, 3 * SEG:3 * SEG + 3].set(params["w2v"])

    b2 = jnp.zeros((1, 4 * SEG), jnp.float32)
    b2 = b2.at[0, 0:K].set(params["b2p"][0])
    b2 = b2.at[0, SEG:SEG + K].set(params["b2p"][1])
    b2 = b2.at[0, 2 * SEG:2 * SEG + K].set(params["b2p"][2])
    b2 = b2.at[0, 3 * SEG:3 * SEG + 3].set(params["b2v"][0])
    return w1_sm, w1_hs, b1, w2, b2


# ----------------------------------------------------------------------------
# Wrapper
# ----------------------------------------------------------------------------
def handpose_forward(keypoint_scoremap, hand_sides, params, *, tb=256):
    B, K, H, W = keypoint_scoremap.shape
    assert K == NUM_KEYPOINTS
    HW = H * W
    D = K * HW                                    # 21*256 = 5376 = 42*128

    # No f32 copy of the big tensor: feed native dtype, f32 MXU accumulation.
    sm_flat = keypoint_scoremap.reshape(B, D)
    hs = hand_sides.astype(jnp.float32)

    w1_sm, w1_hs, b1, w2, b2 = pack_params(params, HW)
    w1_sm = w1_sm.astype(sm_flat.dtype)           # match the big operand's dtype

    # Batch tiling: TB=256 keeps the double-buffered score-map tile well under
    # the default scoped-VMEM budget on v5e/v6e/v7x; bump to 512 on v6e with
    # vmem_limit_bytes if B is large.
    TB = B if B <= tb else tb
    grid = (pl.cdiv(B, TB),)

    out = pl.pallas_call(
        _handpose_kernel,
        grid=grid,
        in_specs=[
            pl.BlockSpec((TB, D), lambda i: (i, 0)),            # score-map tile
            pl.BlockSpec((TB, 2), lambda i: (i, 0)),            # hand sides
            pl.BlockSpec((D, 2 * HIDDEN), lambda i: (0, 0)),    # W1 (scoremap)
            pl.BlockSpec((2, 2 * HIDDEN), lambda i: (0, 0)),    # W1 (hand sides)
            pl.BlockSpec((1, 2 * HIDDEN), lambda i: (0, 0)),    # b1
            pl.BlockSpec((2 * HIDDEN, 4 * SEG), lambda i: (0, 0)),  # W2
            pl.BlockSpec((1, 4 * SEG), lambda i: (0, 0)),       # b2
        ],
        out_specs=pl.BlockSpec((TB, 4 * SEG), lambda i: (i, 0)),
        out_shape=jax.ShapeDtypeStruct((B, 4 * SEG), jnp.float32),
        compiler_params=pltpu.CompilerParams(
            dimension_semantics=("parallel",)),
    )(sm_flat, hs, w1_sm, w1_hs, b1, w2, b2)

    # Consumer-facing reshuffle (module semantics require [B, K, 3]).
    coords = out[:, :3 * SEG].reshape(B, 3, SEG)[:, :, :K]      # [B, 3, K]
    keypoint_coord3d = jnp.transpose(coords, (0, 2, 1))         # [B, K, 3]
    rot_matrix = out[:, 3 * SEG:3 * SEG + 9].reshape(B, 3, 3)   # [B, 3, 3]
    return keypoint_coord3d, rot_matrix


# ----------------------------------------------------------------------------
# Deterministic synthetic parameters (shapes implied by the forward pass)
# ----------------------------------------------------------------------------
def init_params(key):
    K, HID = NUM_KEYPOINTS, HIDDEN
    ks = jax.random.split(key, 12)
    s = 0.1
    return {
        "w1p_s": jax.random.normal(ks[0], (K, HID), jnp.float32) * s,
        "w1p_h": jax.random.normal(ks[1], (2, HID), jnp.float32) * s,
        "b1p":   jax.random.normal(ks[2], (1, HID), jnp.float32) * s,
        "w2px":  jax.random.normal(ks[3], (HID, K), jnp.float32) * s,
        "w2py":  jax.random.normal(ks[4], (HID, K), jnp.float32) * s,
        "w2pz":  jax.random.normal(ks[5], (HID, K), jnp.float32) * s,
        "b2p":   jax.random.normal(ks[6], (3, K), jnp.float32) * s,
        "w1v_s": jax.random.normal(ks[7], (K, HID), jnp.float32) * s,
        "w1v_h": jax.random.normal(ks[8], (2, HID), jnp.float32) * s,
        "b1v":   jax.random.normal(ks[9], (1, HID), jnp.float32) * s,
        "w2v":   jax.random.normal(ks[10], (HID, 3), jnp.float32) * s,
        "b2v":   jax.random.normal(ks[11], (1, 3), jnp.float32) * s,
    }


# ----------------------------------------------------------------------------
# Pure-JAX reference (mirrors the PyTorch forward semantics)
# ----------------------------------------------------------------------------
def handpose_reference(keypoint_scoremap, hand_sides, params):
    B, K, H, W = keypoint_scoremap.shape
    pooled = jnp.mean(keypoint_scoremap.reshape(B, K, H * W), axis=-1)
    hs = hand_sides

    h_p = jax.nn.relu(pooled @ params["w1p_s"] + hs @ params["w1p_h"] + params["b1p"])
    cx = h_p @ params["w2px"] + params["b2p"][0]
    cy = h_p @ params["w2py"] + params["b2p"][1]
    cz = h_p @ params["w2pz"] + params["b2p"][2]
    coord_can = jnp.stack([cx, cy, cz], axis=-1)                     # [B, K, 3]

    h_v = jax.nn.relu(pooled @ params["w1v_s"] + hs @ params["w1v_h"] + params["b1v"])
    rp = h_v @ params["w2v"] + params["b2v"]                         # [B, 3]
    ux, uy, uz = rp[:, 0], rp[:, 1], rp[:, 2]
    theta = jnp.sqrt(ux * ux + uy * uy + uz * uz + 1e-8)
    st, ct = jnp.sin(theta), jnp.cos(theta)
    oc = 1.0 - ct
    nx, ny, nz = ux / theta, uy / theta, uz / theta
    R = jnp.stack([
        jnp.stack([ct + nx * nx * oc, nx * ny * oc - nz * st, nx * nz * oc + ny * st], -1),
        jnp.stack([ny * nx * oc + nz * st, ct + ny * ny * oc, ny * nz * oc - nx * st], -1),
        jnp.stack([nz * nx * oc - ny * st, nz * ny * oc + nx * st, ct + nz * nz * oc], -1),
    ], axis=-2)                                                      # [B, 3, 3]

    cond_right = jnp.argmax(hand_sides, axis=1) == 1                 # torch.eq(argmax, 1)
    flip = jnp.where(cond_right[:, None, None],
                     coord_can * jnp.array([1.0, 1.0, -1.0], jnp.float32),
                     coord_can)
    coord3d = jnp.einsum("bkc,bcd->bkd", flip, R)                    # torch.matmul
    return coord3d, R


if __name__ == "__main__":
    key = jax.random.PRNGKey(0)
    k_p, k_sm, k_hs = jax.random.split(key, 3)

    B, K, H, W = 2, NUM_KEYPOINTS, 16, 16
    params = init_params(k_p)
    keypoint_scoremap = jax.random.normal(k_sm, (B, K, H, W), jnp.float32)
    hand_sides = jax.random.normal(k_hs, (B, 2), jnp.float32)

    coord3d, rot = handpose_forward(keypoint_scoremap, hand_sides, params)
    coord3d, rot = jax.block_until_ready((coord3d, rot))

    coord3d_ref, rot_ref = handpose_reference(keypoint_scoremap, hand_sides, params)
    assert coord3d.shape == (B, K, 3) and rot.shape == (B, 3, 3)
    assert jnp.allclose(coord3d, coord3d_ref, atol=2e-3, rtol=2e-3)
    assert jnp.allclose(rot, rot_ref, atol=2e-3, rtol=2e-3)

    print("KERNEL_OK")
</pallas_src>

<mosaic_0001>
module attributes {stable_mosaic.version = 11 : i64} {
  func.func @_handpose_kernel(%arg0: i32, %arg1: memref<2x5376xf32, #tpu.memory_space<vmem>>, %arg2: memref<2x2xf32, #tpu.memory_space<vmem>>, %arg3: memref<5376x64xf32, #tpu.memory_space<vmem>>, %arg4: memref<2x64xf32, #tpu.memory_space<vmem>>, %arg5: memref<1x64xf32, #tpu.memory_space<vmem>>, %arg6: memref<64x512xf32, #tpu.memory_space<vmem>>, %arg7: memref<1x512xf32, #tpu.memory_space<vmem>>, %arg8: memref<2x512xf32, #tpu.memory_space<vmem>>) attributes {dimension_semantics = [#tpu.dimension_semantics<parallel>], iteration_bounds = array<i64: 1>, scalar_prefetch = 0 : i64, scratch_operands = 0 : i64, tpu.core_type = #tpu.core_type<tc>, window_params = [{transform_indices = @transform_0, window_bounds = array<i64: 2, 5376>}, {transform_indices = @transform_1, window_bounds = array<i64: 2, 2>}, {pipeline_mode = #tpu.pipeline_mode<synchronous>, transform_indices = @transform_2, window_bounds = array<i64: 5376, 64>}, {pipeline_mode = #tpu.pipeline_mode<synchronous>, transform_indices = @transform_3, window_bounds = array<i64: 2, 64>}, {pipeline_mode = #tpu.pipeline_mode<synchronous>, transform_indices = @transform_4, window_bounds = array<i64: 1, 64>}, {pipeline_mode = #tpu.pipeline_mode<synchronous>, transform_indices = @transform_5, window_bounds = array<i64: 64, 512>}, {pipeline_mode = #tpu.pipeline_mode<synchronous>, transform_indices = @transform_6, window_bounds = array<i64: 1, 512>}, {transform_indices = @transform_7, window_bounds = array<i64: 2, 512>}]} {
    %c0 = arith.constant 0 : index
    %c0_0 = arith.constant 0 : index
    %0 = vector.load %arg1[%c0, %c0_0] : memref<2x5376xf32, #tpu.memory_space<vmem>>, vector<2x5376xf32>
    %c0_1 = arith.constant 0 : index
    %c0_2 = arith.constant 0 : index
    %1 = vector.load %arg3[%c0_1, %c0_2] : memref<5376x64xf32, #tpu.memory_space<vmem>>, vector<5376x64xf32>
    %cst = arith.constant dense<0.000000e+00> : vector<2x64xf32>
    %2 = tpu.matmul %0, %1, %cst {dimension_numbers = #tpu.dot_dimension_numbers<[1], [0], [0], [1], [0, 0, 1, 1], [], []>} : vector<2x5376xf32>, vector<5376x64xf32>, vector<2x64xf32> -> vector<2x64xf32>
    %c0_3 = arith.constant 0 : index
    %c0_4 = arith.constant 0 : index
    %3 = vector.load %arg2[%c0_3, %c0_4] : memref<2x2xf32, #tpu.memory_space<vmem>>, vector<2x2xf32>
    %c0_5 = arith.constant 0 : index
    %c0_6 = arith.constant 0 : index
    %4 = vector.load %arg4[%c0_5, %c0_6] : memref<2x64xf32, #tpu.memory_space<vmem>>, vector<2x64xf32>
    %cst_7 = arith.constant dense<0.000000e+00> : vector<2x64xf32>
    %5 = tpu.matmul %3, %4, %cst_7 {dimension_numbers = #tpu.dot_dimension_numbers<[1], [0], [0], [1], [0, 0, 1, 1], [], []>} : vector<2x2xf32>, vector<2x64xf32>, vector<2x64xf32> -> vector<2x64xf32>
    %6 = arith.addf %2, %5 : vector<2x64xf32>
    %c0_8 = arith.constant 0 : index
    %c0_9 = arith.constant 0 : index
    %7 = vector.load %arg5[%c0_8, %c0_9] : memref<1x64xf32, #tpu.memory_space<vmem>>, vector<1x64xf32>
    %8 = vector.broadcast %7 : vector<1x64xf32> to vector<2x64xf32>
    %9 = arith.addf %6, %8 : vector<2x64xf32>
    %cst_10 = arith.constant 0.000000e+00 : f32
    %10 = vector.broadcast %cst_10 : f32 to vector<2x64xf32>
    %11 = arith.maximumf %9, %10 : vector<2x64xf32>
    %c0_11 = arith.constant 0 : index
    %c0_12 = arith.constant 0 : index
    %12 = vector.load %arg6[%c0_11, %c0_12] : memref<64x512xf32, #tpu.memory_space<vmem>>, vector<64x512xf32>
    %cst_13 = arith.constant dense<0.000000e+00> : vector<2x512xf32>
    %13 = tpu.matmul %11, %12, %cst_13 {dimension_numbers = #tpu.dot_dimension_numbers<[1], [0], [0], [1], [0, 0, 1, 1], [], []>} : vector<2x64xf32>, vector<64x512xf32>, vector<2x512xf32> -> vector<2x512xf32>
    %c0_14 = arith.constant 0 : index
    %c0_15 = arith.constant 0 : index
    %14 = vector.load %arg7[%c0_14, %c0_15] : memref<1x512xf32, #tpu.memory_space<vmem>>, vector<1x512xf32>
    %15 = vector.broadcast %14 : vector<1x512xf32> to vector<2x512xf32>
    %16 = arith.addf %13, %15 : vector<2x512xf32>
    %17 = vector.extract_strided_slice %16 {offsets = [0, 0], sizes = [2, 128], strides = [1, 1]} : vector<2x512xf32> to vector<2x128xf32>
    %18 = vector.extract_strided_slice %16 {offsets = [0, 128], sizes = [2, 128], strides = [1, 1]} : vector<2x512xf32> to vector<2x128xf32>
    %19 = vector.extract_strided_slice %16 {offsets = [0, 256], sizes = [2, 128], strides = [1, 1]} : vector<2x512xf32> to vector<2x128xf32>
    %20 = vector.extract_strided_slice %16 {offsets = [0, 384], sizes = [2, 1], strides = [1, 1]} : vector<2x512xf32> to vector<2x1xf32>
    %21 = vector.extract_strided_slice %16 {offsets = [0, 385], sizes = [2, 1], strides = [1, 1]} : vector<2x512xf32> to vector<2x1xf32>
    %22 = vector.extract_strided_slice %16 {offsets = [0, 386], sizes = [2, 1], strides = [1, 1]} : vector<2x512xf32> to vector<2x1xf32>
    %23 = arith.mulf %20, %20 : vector<2x1xf32>
    %24 = arith.mulf %21, %21 : vector<2x1xf32>
    %25 = arith.addf %23, %24 : vector<2x1xf32>
    %26 = arith.mulf %22, %22 : vector<2x1xf32>
    %27 = arith.addf %25, %26 : vector<2x1xf32>
    %cst_16 = arith.constant 9.99999993E-9 : f32
    %28 = vector.broadcast %cst_16 : f32 to vector<2x1xf32>
    %29 = arith.addf %27, %28 : vector<2x1xf32>
    %30 = math.rsqrt %29 : vector<2x1xf32>
    %31 = arith.mulf %29, %30 : vector<2x1xf32>
    %32 = math.sin %31 : vector<2x1xf32>
    %33 = math.cos %31 : vector<2x1xf32>
    %cst_17 = arith.constant 1.000000e+00 : f32
    %34 = vector.broadcast %cst_17 : f32 to vector<2x1xf32>
    %35 = arith.subf %34, %33 : vector<2x1xf32>
    %36 = arith.mulf %20, %30 : vector<2x1xf32>
    %37 = arith.mulf %21, %30 : vector<2x1xf32>
    %38 = arith.mulf %22, %30 : vector<2x1xf32>
    %39 = arith.mulf %36, %36 : vector<2x1xf32>
    %40 = arith.mulf %39, %35 : vector<2x1xf32>
    %41 = arith.addf %33, %40 : vector<2x1xf32>
    %42 = arith.mulf %36, %37 : vector<2x1xf32>
    %43 = arith.mulf %42, %35 : vector<2x1xf32>
    %44 = arith.mulf %38, %32 : vector<2x1xf32>
    %45 = arith.subf %43, %44 : vector<2x1xf32>
    %46 = arith.mulf %36, %38 : vector<2x1xf32>
    %47 = arith.mulf %46, %35 : vector<2x1xf32>
    %48 = arith.mulf %37, %32 : vector<2x1xf32>
    %49 = arith.addf %47, %48 : vector<2x1xf32>
    %50 = arith.mulf %37, %36 : vector<2x1xf32>
    %51 = arith.mulf %50, %35 : vector<2x1xf32>
    %52 = arith.mulf %38, %32 : vector<2x1xf32>
    %53 = arith.addf %51, %52 : vector<2x1xf32>
    %54 = arith.mulf %37, %37 : vector<2x1xf32>
    %55 = arith.mulf %54, %35 : vector<2x1xf32>
    %56 = arith.addf %33, %55 : vector<2x1xf32>
    %57 = arith.mulf %37, %38 : vector<2x1xf32>
    %58 = arith.mulf %57, %35 : vector<2x1xf32>
    %59 = arith.mulf %36, %32 : vector<2x1xf32>
    %60 = arith.subf %58, %59 : vector<2x1xf32>
    %61 = arith.mulf %38, %36 : vector<2x1xf32>
    %62 = arith.mulf %61, %35 : vector<2x1xf32>
    %63 = arith.mulf %37, %32 : vector<2x1xf32>
    %64 = arith.subf %62, %63 : vector<2x1xf32>
    %65 = arith.mulf %38, %37 : vector<2x1xf32>
    %66 = arith.mulf %65, %35 : vector<2x1xf32>
    %67 = arith.mulf %36, %32 : vector<2x1xf32>
    %68 = arith.addf %66, %67 : vector<2x1xf32>
    %69 = arith.mulf %38, %38 : vector<2x1xf32>
    %70 = arith.mulf %69, %35 : vector<2x1xf32>
    %71 = arith.addf %33, %70 : vector<2x1xf32>
    %c0_18 = arith.constant 0 : index
    %c0_19 = arith.constant 0 : index
    %72 = vector.load %arg2[%c0_18, %c0_19] : memref<2x2xf32, #tpu.memory_space<vmem>>, vector<2x2xf32>
    %73 = vector.extract_strided_slice %72 {offsets = [0, 1], sizes = [2, 1], strides = [1, 1]} : vector<2x2xf32> to vector<2x1xf32>
    %74 = vector.extract_strided_slice %72 {offsets = [0, 0], sizes = [2, 1], strides = [1, 1]} : vector<2x2xf32> to vector<2x1xf32>
    %75 = arith.cmpf ogt, %73, %74 : vector<2x1xf32>
    %cst_20 = arith.constant 0.000000e+00 : f32
    %76 = vector.broadcast %cst_20 : f32 to vector<2x128xf32>
    %77 = arith.subf %76, %19 : vector<2x128xf32>
    %78 = vector.shape_cast %75 : vector<2x1xi1> to vector<2x1xi1>
    %79 = vector.broadcast %78 : vector<2x1xi1> to vector<2x128xi1>
    %80 = arith.select %79, %77, %19 : vector<2x128xi1>, vector<2x128xf32>
    %81 = vector.broadcast %41 : vector<2x1xf32> to vector<2x128xf32>
    %82 = arith.mulf %17, %81 : vector<2x128xf32>
    %83 = vector.broadcast %53 : vector<2x1xf32> to vector<2x128xf32>
    %84 = arith.mulf %18, %83 : vector<2x128xf32>
    %85 = arith.addf %82, %84 : vector<2x128xf32>
    %86 = vector.broadcast %64 : vector<2x1xf32> to vector<2x128xf32>
    %87 = arith.mulf %80, %86 : vector<2x128xf32>
    %88 = arith.addf %85, %87 : vector<2x128xf32>
    %89 = vector.broadcast %45 : vector<2x1xf32> to vector<2x128xf32>
    %90 = arith.mulf %17, %89 : vector<2x128xf32>
    %91 = vector.broadcast %56 : vector<2x1xf32> to vector<2x128xf32>
    %92 = arith.mulf %18, %91 : vector<2x128xf32>
    %93 = arith.addf %90, %92 : vector<2x128xf32>
    %94 = vector.broadcast %68 : vector<2x1xf32> to vector<2x128xf32>
    %95 = arith.mulf %80, %94 : vector<2x128xf32>
    %96 = arith.addf %93, %95 : vector<2x128xf32>
    %97 = vector.broadcast %49 : vector<2x1xf32> to vector<2x128xf32>
    %98 = arith.mulf %17, %97 : vector<2x128xf32>
    %99 = vector.broadcast %60 : vector<2x1xf32> to vector<2x128xf32>
    %100 = arith.mulf %18, %99 : vector<2x128xf32>
    %101 = arith.addf %98, %100 : vector<2x128xf32>
    %102 = vector.broadcast %71 : vector<2x1xf32> to vector<2x128xf32>
    %103 = arith.mulf %80, %102 : vector<2x128xf32>
    %104 = arith.addf %101, %103 : vector<2x128xf32>
    %cst_21 = arith.constant 0.000000e+00 : f32
    %105 = vector.broadcast %cst_21 : f32 to vector<2x119xf32>
    %106 = tpu.concatenate %41, %45, %49, %53, %56, %60, %64, %68, %71, %105 in 1 : vector<2x1xf32>, vector<2x1xf32>, vector<2x1xf32>, vector<2x1xf32>, vector<2x1xf32>, vector<2x1xf32>, vector<2x1xf32>, vector<2x1xf32>, vector<2x1xf32>, vector<2x119xf32> -> vector<2x128xf32>
    %107 = tpu.concatenate %88, %96, %104, %106 in 1 : vector<2x128xf32>, vector<2x128xf32>, vector<2x128xf32>, vector<2x128xf32> -> vector<2x512xf32>
    %c0_22 = arith.constant 0 : index
    %c0_23 = arith.constant 0 : index
    %108 = vector.load %arg8[%c0_22, %c0_23] : memref<2x512xf32, #tpu.memory_space<vmem>>, vector<2x512xf32>
    tpu.vector_store %arg8[%c0_22, %c0_23], %107 {strides = array<i32>} : memref<2x512xf32, #tpu.memory_space<vmem>>, vector<2x512xf32>,
    return
  }
  func.func @transform_0(%arg0: i32) -> (i32, i32) {
    %c0_i32 = arith.constant 0 : i32
    %c0_i32_0 = arith.constant 0 : i32
    return %arg0, %c0_i32 : i32, i32
  }
  func.func @transform_1(%arg0: i32) -> (i32, i32) {
    %c0_i32 = arith.constant 0 : i32
    %c0_i32_0 = arith.constant 0 : i32
    return %arg0, %c0_i32 : i32, i32
  }
  func.func @transform_2(%arg0: i32) -> (i32, i32) {
    %c0_i32 = arith.constant 0 : i32
    %c0_i32_0 = arith.constant 0 : i32
    %c0_i32_1 = arith.constant 0 : i32
    return %c0_i32, %c0_i32_0 : i32, i32
  }
  func.func @transform_3(%arg0: i32) -> (i32, i32) {
    %c0_i32 = arith.constant 0 : i32
    %c0_i32_0 = arith.constant 0 : i32
    %c0_i32_1 = arith.constant 0 : i32
    return %c0_i32, %c0_i32_0 : i32, i32
  }
  func.func @transform_4(%arg0: i32) -> (i32, i32) {
    %c0_i32 = arith.constant 0 : i32
    %c0_i32_0 = arith.constant 0 : i32
    %c0_i32_1 = arith.constant 0 : i32
    return %c0_i32, %c0_i32_0 : i32, i32
  }
  func.func @transform_5(%arg0: i32) -> (i32, i32) {
    %c0_i32 = arith.constant 0 : i32
    %c0_i32_0 = arith.constant 0 : i32
    %c0_i32_1 = arith.constant 0 : i32
    return %c0_i32, %c0_i32_0 : i32, i32
  }
  func.func @transform_6(%arg0: i32) -> (i32, i32) {
    %c0_i32 = arith.constant 0 : i32
    %c0_i32_0 = arith.constant 0 : i32
    %c0_i32_1 = arith.constant 0 : i32
    return %c0_i32, %c0_i32_0 : i32, i32
  }
  func.func @transform_7(%arg0: i32) -> (i32, i32) {
    %c0_i32 = arith.constant 0 : i32
    %c0_i32_0 = arith.constant 0 : i32
    return %arg0, %c0_i32 : i32, i32
  }
}

</mosaic_0001>

<llo_original>
// kernel: tpu_custom_call.1
$region0: #{tpu_custom_call.1}
  #allocation0 [shape = 'u32[]', space=smem, size = 0x4, offset = 0x4, fixed_abs, tag = 'smem constant byte address 0x4 - core index']
  #allocation1 [shape = 'u32[72,128]{1,0:T(1,128)}', space=vmem, size = 0x9000, scoped, tag = 'internal scratch']
  %s0 = inlined_call_operand.vmem [shape: f32[2,5376], index: 0, kind: input, shape index: {}]
  %s1 = inlined_call_operand.vmem [shape: f32[2,2], index: 1, kind: input, shape index: {}]
  %s2 = inlined_call_operand.vmem [shape: f32[5376,64], index: 2, kind: input, shape index: {}]
  %s3 = inlined_call_operand.vmem [shape: f32[2,64], index: 3, kind: input, shape index: {}]
  %s4 = inlined_call_operand.vmem [shape: f32[1,64], index: 4, kind: input, shape index: {}]
  %s5 = inlined_call_operand.vmem [shape: f32[64,512], index: 5, kind: input, shape index: {}]
  %s6 = inlined_call_operand.vmem [shape: f32[1,512], index: 6, kind: input, shape index: {}]
  %s7 = inlined_call_operand.hbm [shape: f32[2,512], index: 7, kind: output, shape index: {}]
  %s8 = sld [smem:[#allocation0]]
  $region38: #{tpu_custom_call.1} parent=0
    _
  %s10 = ssub.s32 1, %s8
  %s11 = scalar_select 0, %s10, %s8
  $region1: #{tpu_custom_call.1} parent=0
    #allocation2 [shape = 'u8[4096]{0}', space=vmem, size = 0x1000, scoped, tag = 'output window, operand 0, single buffered']
    #allocation3 [shape = 's32[1]{0}', space=sflag, size = 0x4, scoped, tag = 'scoped memory for tpu_custom_call.1']
    %12 = vsyncpa [#allocation3], 0
    // Predicated region
    $region2: #{tpu_custom_call.1} parent=1 // pred_check
      _
    $region3: #{tpu_custom_call.1} parent=1 // pred_check_branch
      %14 = sbr.rel (0) target = $region5
    $region4: #{tpu_custom_call.1} parent=1 // pred_region
      _
    $region5: #{tpu_custom_call.1} parent=1 // pred_fallthru
      _
    // Predicated region
    $region6: #{tpu_custom_call.1} parent=1 // pred_check
      _
    $region7: #{tpu_custom_call.1} parent=1 // pred_check_branch
      %16 = sbr.rel (0) target = $region9
    $region8: #{tpu_custom_call.1} parent=1 // pred_region
      _
    $region9: #{tpu_custom_call.1} parent=1 // pred_fallthru
      _
    // Predicated region
    $region10: #{tpu_custom_call.1} parent=1 // pred_check
      _
    $region11: #{tpu_custom_call.1} parent=1 // pred_check_branch
      %18 = sbr.rel (0) target = $region13
    $region12: #{tpu_custom_call.1} parent=1 // pred_region
      _
    $region13: #{tpu_custom_call.1} parent=1 // pred_fallthru
      _
    // Predicated region
    $region14: #{tpu_custom_call.1} parent=1 // pred_check
      _
    $region15: #{tpu_custom_call.1} parent=1 // pred_check_branch
      %20 = sbr.rel (0) target = $region17
    $region16: #{tpu_custom_call.1} parent=1 // pred_region
      _
    $region17: #{tpu_custom_call.1} parent=1 // pred_fallthru
      _
    // Predicated region
    $region18: #{tpu_custom_call.1} parent=1 // pred_check
      _
    $region19: #{tpu_custom_call.1} parent=1 // pred_check_branch
      %22 = sbr.rel (0) target = $region21
    $region20: #{tpu_custom_call.1} parent=1 // pred_region
      _
    $region21: #{tpu_custom_call.1} parent=1 // pred_fallthru
      _
    // Predicated region
    $region22: #{tpu_custom_call.1} parent=1 // pred_check
      _
    $region23: #{tpu_custom_call.1} parent=1 // pred_check_branch
      %24 = sbr.rel (0) target = $region25
    $region24: #{tpu_custom_call.1} parent=1 // pred_region
      _
    $region25: #{tpu_custom_call.1} parent=1 // pred_fallthru
      _
    // Predicated region
    $region26: #{tpu_custom_call.1} parent=1 // pred_check
      _
    $region27: #{tpu_custom_call.1} parent=1 // pred_check_branch
      %26 = sbr.rel (0) target = $region29
    $region28: #{tpu_custom_call.1} parent=1 // pred_region
      _
    $region29: #{tpu_custom_call.1} parent=1 // pred_fallthru
      _
    %v27 = vld [vmem:[%s0] sm:$0xff]
    %v28 = vld [vmem:[%s0 + $0x8] sm:$0xff]
    %v29 = vld [vmem:[%s0 + $0x10] sm:$0xff]
    %v30 = vld [vmem:[%s0 + $0x18] sm:$0xff]
    %v31 = vld [vmem:[%s0 + $0x20] sm:$0xff]
    %v32 = vld [vmem:[%s0 + $0x28] sm:$0xff]
    %v33 = vld [vmem:[%s0 + $0x30] sm:$0xff]
    %v34 = vld [vmem:[%s0 + $0x38] sm:$0xff]
    %v35 = vld [vmem:[%s0 + $0x40] sm:$0xff]
    %v36 = vld [vmem:[%s0 + $0x48] sm:$0xff]
    %v37 = vld [vmem:[%s0 + $0x50] sm:$0xf]
    %v38 = vld [vmem:[%s2] sm:$0xff]
    %v39 = vld [vmem:[%s2 + $0x8] sm:$0xff]
    %v40 = vld [vmem:[%s2 + $0x10] sm:$0xff]
    %v41 = vld [vmem:[%s2 + $0x18] sm:$0xff]
    %v42 = vld [vmem:[%s2 + $0x20] sm:$0xff]
    %v43 = vld [vmem:[%s2 + $0x28] sm:$0xff]
    %v44 = vld [vmem:[%s2 + $0x30] sm:$0xff]
    %v45 = vld [vmem:[%s2 + $0x38] sm:$0xff]
    %v46 = vld [vmem:[%s2 + $0x40] sm:$0xff]
    %v47 = vld [vmem:[%s2 + $0x48] sm:$0xff]
    %v48 = vld [vmem:[%s2 + $0x50] sm:$0xff]
    %v49 = vld [vmem:[%s2 + $0x58] sm:$0xff]
    %v50 = vld [vmem:[%s2 + $0x60] sm:$0xff]
    %v51 = vld [vmem:[%s2 + $0x68] sm:$0xff]
    %v52 = vld [vmem:[%s2 + $0x70] sm:$0xff]
    %v53 = vld [vmem:[%s2 + $0x78] sm:$0xff]
    %v54 = vld [vmem:[%s2 + $0x80] sm:$0xff]
    %v55 = vld [vmem:[%s2 + $0x88] sm:$0xff]
    %v56 = vld [vmem:[%s2 + $0x90] sm:$0xff]
    %v57 = vld [vmem:[%s2 + $0x98] sm:$0xff]
    %v58 = vld [vmem:[%s2 + $0xa0] sm:$0xff]
    %v59 = vld [vmem:[%s2 + $0xa8] sm:$0xff]
    %v60 = vld [vmem:[%s2 + $0xb0] sm:$0xff]
    %v61 = vld [vmem:[%s2 + $0xb8] sm:$0xff]
    %v62 = vld [vmem:[%s2 + $0xc0] sm:$0xff]
    %v63 = vld [vmem:[%s2 + $0xc8] sm:$0xff]
    %v64 = vld [vmem:[%s2 + $0xd0] sm:$0xff]
    %v65 = vld [vmem:[%s2 + $0xd8] sm:$0xff]
    %v66 = vld [vmem:[%s2 + $0xe0] sm:$0xff]
    %v67 = vld [vmem:[%s2 + $0xe8] sm:$0xff]
    %v68 = vld [vmem:[%s2 + $0xf0] sm:$0xff]
    %v69 = vld [vmem:[%s2 + $0xf8] sm:$0xff]
    %v70 = vld [vmem:[%s2 + $0x100] sm:$0xff]
    %v71 = vld [vmem:[%s2 + $0x108] sm:$0xff]
    %v72 = vld [vmem:[%s2 + $0x110] sm:$0xff]
    %v73 = vld [vmem:[%s2 + $0x118] sm:$0xff]
    %v74 = vld [vmem:[%s2 + $0x120] sm:$0xff]
    %v75 = vld [vmem:[%s2 + $0x128] sm:$0xff]
    %v76 = vld [vmem:[%s2 + $0x130] sm:$0xff]
    %v77 = vld [vmem:[%s2 + $0x138] sm:$0xff]
    %v78 = vld [vmem:[%s2 + $0x140] sm:$0xff]
    %v79 = vld [vmem:[%s2 + $0x148] sm:$0xff]
    %v80 = vld [vmem:[%s2 + $0x150] sm:$0xff]
    %v81 = vld [vmem:[%s2 + $0x158] sm:$0xff]
    %v82 = vld [vmem:[%s2 + $0x160] sm:$0xff]
    %v83 = vld [vmem:[%s2 + $0x168] sm:$0xff]
    %v84 = vld [vmem:[%s2 + $0x170] sm:$0xff]
    %v85 = vld [vmem:[%s2 + $0x178] sm:$0xff]
    %v86 = vld [vmem:[%s2 + $0x180] sm:$0xff]
    %v87 = vld [vmem:[%s2 + $0x188] sm:$0xff]
    %v88 = vld [vmem:[%s2 + $0x190] sm:$0xff]
    %v89 = vld [vmem:[%s2 + $0x198] sm:$0xff]
    %v90 = vld [vmem:[%s2 + $0x1a0] sm:$0xff]
    %v91 = vld [vmem:[%s2 + $0x1a8] sm:$0xff]
    %v92 = vld [vmem:[%s2 + $0x1b0] sm:$0xff]
    %v93 = vld [vmem:[%s2 + $0x1b8] sm:$0xff]
    %v94 = vld [vmem:[%s2 + $0x1c0] sm:$0xff]
    %v95 = vld [vmem:[%s2 + $0x1c8] sm:$0xff]
    %v96 = vld [vmem:[%s2 + $0x1d0] sm:$0xff]
    %v97 = vld [vmem:[%s2 + $0x1d8] sm:$0xff]
    %v98 = vld [vmem:[%s2 + $0x1e0] sm:$0xff]
    %v99 = vld [vmem:[%s2 + $0x1e8] sm:$0xff]
    %v100 = vld [vmem:[%s2 + $0x1f0] sm:$0xff]
    %v101 = vld [vmem:[%s2 + $0x1f8] sm:$0xff]
    %v102 = vld [vmem:[%s2 + $0x200] sm:$0xff]
    %v103 = vld [vmem:[%s2 + $0x208] sm:$0xff]
    %v104 = vld [vmem:[%s2 + $0x210] sm:$0xff]
    %v105 = vld [vmem:[%s2 + $0x218] sm:$0xff]
    %v106 = vld [vmem:[%s2 + $0x220] sm:$0xff]
    %v107 = vld [vmem:[%s2 + $0x228] sm:$0xff]
    %v108 = vld [vmem:[%s2 + $0x230] sm:$0xff]
    %v109 = vld [vmem:[%s2 + $0x238] sm:$0xff]
    %v110 = vld [vmem:[%s2 + $0x240] sm:$0xff]
    %v111 = vld [vmem:[%s2 + $0x248] sm:$0xff]
    %v112 = vld [vmem:[%s2 + $0x250] sm:$0xff]
    %v113 = vld [vmem:[%s2 + $0x258] sm:$0xff]
    %v114 = vld [vmem:[%s2 + $0x260] sm:$0xff]
    %v115 = vld [vmem:[%s2 + $0x268] sm:$0xff]
    %v116 = vld [vmem:[%s2 + $0x270] sm:$0xff]
    %v117 = vld [vmem:[%s2 + $0x278] sm:$0xff]
    %v118 = vld [vmem:[%s2 + $0x280] sm:$0xff]
    %v119 = vld [vmem:[%s2 + $0x288] sm:$0xff]
    %v120 = vld [vmem:[%s2 + $0x290] sm:$0xff]
    %v121 = vld [vmem:[%s2 + $0x298] sm:$0xff]
    %v122 = vld [vmem:[%s2 + $0x2a0] sm:$0xff]
    %v123 = vld [vmem:[%s2 + $0x2a8] sm:$0xff]
    %v124 = vld [vmem:[%s2 + $0x2b0] sm:$0xff]
    %v125 = vld [vmem:[%s2 + $0x2b8] sm:$0xff]
    %v126 = vld [vmem:[%s2 + $0x2c0] sm:$0xff]
    %v127 = vld [vmem:[%s2 + $0x2c8] sm:$0xff]
    %v128 = vld [vmem:[%s2 + $0x2d0] sm:$0xff]
    %v129 = vld [vmem:[%s2 + $0x2d8] sm:$0xff]
    %v130 = vld [vmem:[%s2 + $0x2e0] sm:$0xff]
    %v131 = vld [vmem:[%s2 + $0x2e8] sm:$0xff]
    %v132 = vld [vmem:[%s2 + $0x2f0] sm:$0xff]
    %v133 = vld [vmem:[%s2 + $0x2f8] sm:$0xff]
    %v134 = vld [vmem:[%s2 + $0x300] sm:$0xff]
    %v135 = vld [vmem:[%s2 + $0x308] sm:$0xff]
    %v136 = vld [vmem:[%s2 + $0x310] sm:$0xff]
    %v137 = vld [vmem:[%s2 + $0x318] sm:$0xff]
    %v138 = vld [vmem:[%s2 + $0x320] sm:$0xff]
    %v139 = vld [vmem:[%s2 + $0x328] sm:$0xff]
    %v140 = vld [vmem:[%s2 + $0x330] sm:$0xff]
    %v141 = vld [vmem:[%s2 + $0x338] sm:$0xff]
    %v142 = vld [vmem:[%s2 + $0x340] sm:$0xff]
    %v143 = vld [vmem:[%s2 + $0x348] sm:$0xff]
    %v144 = vld [vmem:[%s2 + $0x350] sm:$0xff]
    %v145 = vld [vmem:[%s2 + $0x358] sm:$0xff]
    %v146 = vld [vmem:[%s2 + $0x360] sm:$0xff]
    %v147 = vld [vmem:[%s2 + $0x368] sm:$0xff]
    %v148 = vld [vmem:[%s2 + $0x370] sm:$0xff]
    %v149 = vld [vmem:[%s2 + $0x378] sm:$0xff]
    %v150 = vld [vmem:[%s2 + $0x380] sm:$0xff]
    %v151 = vld [vmem:[%s2 + $0x388] sm:$0xff]
    %v152 = vld [vmem:[%s2 + $0x390] sm:$0xff]
    %v153 = vld [vmem:[%s2 + $0x398] sm:$0xff]
    %v154 = vld [vmem:[%s2 + $0x3a0] sm:$0xff]
    %v155 = vld [vmem:[%s2 + $0x3a8] sm:$0xff]
    %v156 = vld [vmem:[%s2 + $0x3b0] sm:$0xff]
    %v157 = vld [vmem:[%s2 + $0x3b8] sm:$0xff]
    %v158 = vld [vmem:[%s2 + $0x3c0] sm:$0xff]
    %v159 = vld [vmem:[%s2 + $0x3c8] sm:$0xff]
    %v160 = vld [vmem:[%s2 + $0x3d0] sm:$0xff]
    %v161 = vld [vmem:[%s2 + $0x3d8] sm:$0xff]
    %v162 = vld [vmem:[%s2 + $0x3e0] sm:$0xff]
    %v163 = vld [vmem:[%s2 + $0x3e8] sm:$0xff]
    %v164 = vld [vmem:[%s2 + $0x3f0] sm:$0xff]
    %v165 = vld [vmem:[%s2 + $0x3f8] sm:$0xff]
    %v166 = vld [vmem:[%s2 + $0x400] sm:$0xff]
    %v167 = vld [vmem:[%s2 + $0x408] sm:$0xff]
    %v168 = vld [vmem:[%s2 + $0x410] sm:$0xff]
    %v169 = vld [vmem:[%s2 + $0x418] sm:$0xff]
    %v170 = vld [vmem:[%s2 + $0x420] sm:$0xff]
    %v171 = vld [vmem:[%s2 + $0x428] sm:$0xff]
    %v172 = vld [vmem:[%s2 + $0x430] sm:$0xff]
    %v173 = vld [vmem:[%s2 + $0x438] sm:$0xff]
    %v174 = vld [vmem:[%s2 + $0x440] sm:$0xff]
    %v175 = vld [vmem:[%s2 + $0x448] sm:$0xff]
    %v176 = vld [vmem:[%s2 + $0x450] sm:$0xff]
    %v177 = vld [vmem:[%s2 + $0x458] sm:$0xff]
    %v178 = vld [vmem:[%s2 + $0x460] sm:$0xff]
    %v179 = vld [vmem:[%s2 + $0x468] sm:$0xff]
    %v180 = vld [vmem:[%s2 + $0x470] sm:$0xff]
    %v181 = vld [vmem:[%s2 + $0x478] sm:$0xff]
    %v182 = vld [vmem:[%s2 + $0x480] sm:$0xff]
    %v183 = vld [vmem:[%s2 + $0x488] sm:$0xff]
    %v184 = vld [vmem:[%s2 + $0x490] sm:$0xff]
    %v185 = vld [vmem:[%s2 + $0x498] sm:$0xff]
    %v186 = vld [vmem:[%s2 + $0x4a0] sm:$0xff]
    %v187 = vld [vmem:[%s2 + $0x4a8] sm:$0xff]
    %v188 = vld [vmem:[%s2 + $0x4b0] sm:$0xff]
    %v189 = vld [vmem:[%s2 + $0x4b8] sm:$0xff]
    %v190 = vld [vmem:[%s2 + $0x4c0] sm:$0xff]
    %v191 = vld [vmem:[%s2 + $0x4c8] sm:$0xff]
    %v192 = vld [vmem:[%s2 + $0x4d0] sm:$0xff]
    %v193 = vld [vmem:[%s2 + $0x4d8] sm:$0xff]
    %v194 = vld [vmem:[%s2 + $0x4e0] sm:$0xff]
    %v195 = vld [vmem:[%s2 + $0x4e8] sm:$0xff]
    %v196 = vld [vmem:[%s2 + $0x4f0] sm:$0xff]
    %v197 = vld [vmem:[%s2 + $0x4f8] sm:$0xff]
    %v198 = vld [vmem:[%s2 + $0x500] sm:$0xff]
    %v199 = vld [vmem:[%s2 + $0x508] sm:$0xff]
    %v200 = vld [vmem:[%s2 + $0x510] sm:$0xff]
    %v201 = vld [vmem:[%s2 + $0x518] sm:$0xff]
    %v202 = vld [vmem:[%s2 + $0x520] sm:$0xff]
    %v203 = vld [vmem:[%s2 + $0x528] sm:$0xff]
    %v204 = vld [vmem:[%s2 + $0x530] sm:$0xff]
    %v205 = vld [vmem:[%s2 + $0x538] sm:$0xff]
    %v206 = vld [vmem:[%s2 + $0x540] sm:$0xff]
    %v207 = vld [vmem:[%s2 + $0x548] sm:$0xff]
    %v208 = vld [vmem:[%s2 + $0x550] sm:$0xff]
    %v209 = vld [vmem:[%s2 + $0x558] sm:$0xff]
    %v210 = vld [vmem:[%s2 + $0x560] sm:$0xff]
    %v211 = vld [vmem:[%s2 + $0x568] sm:$0xff]
    %v212 = vld [vmem:[%s2 + $0x570] sm:$0xff]
    %v213 = vld [vmem:[%s2 + $0x578] sm:$0xff]
    %v214 = vld [vmem:[%s2 + $0x580] sm:$0xff]
    %v215 = vld [vmem:[%s2 + $0x588] sm:$0xff]
    %v216 = vld [vmem:[%s2 + $0x590] sm:$0xff]
    %v217 = vld [vmem:[%s2 + $0x598] sm:$0xff]
    %v218 = vld [vmem:[%s2 + $0x5a0] sm:$0xff]
    %v219 = vld [vmem:[%s2 + $0x5a8] sm:$0xff]
    %v220 = vld [vmem:[%s2 + $0x5b0] sm:$0xff]
    %v221 = vld [vmem:[%s2 + $0x5b8] sm:$0xff]
    %v222 = vld [vmem:[%s2 + $0x5c0] sm:$0xff]
    %v223 = vld [vmem:[%s2 + $0x5c8] sm:$0xff]
    %v224 = vld [vmem:[%s2 + $0x5d0] sm:$0xff]
    %v225 = vld [vmem:[%s2 + $0x5d8] sm:$0xff]
    %v226 = vld [vmem:[%s2 + $0x5e0] sm:$0xff]
    %v227 = vld [vmem:[%s2 + $0x5e8] sm:$0xff]
    %v228 = vld [vmem:[%s2 + $0x5f0] sm:$0xff]
    %v229 = vld [vmem:[%s2 + $0x5f8] sm:$0xff]
    %v230 = vld [vmem:[%s2 + $0x600] sm:$0xff]
    %v231 = vld [vmem:[%s2 + $0x608] sm:$0xff]
    %v232 = vld [vmem:[%s2 + $0x610] sm:$0xff]
    %v233 = vld [vmem:[%s2 + $0x618] sm:$0xff]
    %v234 = vld [vmem:[%s2 + $0x620] sm:$0xff]
    %v235 = vld [vmem:[%s2 + $0x628] sm:$0xff]
    %v236 = vld [vmem:[%s2 + $0x630] sm:$0xff]
    %v237 = vld [vmem:[%s2 + $0x638] sm:$0xff]
    %v238 = vld [vmem:[%s2 + $0x640] sm:$0xff]
    %v239 = vld [vmem:[%s2 + $0x648] sm:$0xff]
    %v240 = vld [vmem:[%s2 + $0x650] sm:$0xff]
    %v241 = vld [vmem:[%s2 + $0x658] sm:$0xff]
    %v242 = vld [vmem:[%s2 + $0x660] sm:$0xff]
    %v243 = vld [vmem:[%s2 + $0x668] sm:$0xff]
    %v244 = vld [vmem:[%s2 + $0x670] sm:$0xff]
    %v245 = vld [vmem:[%s2 + $0x678] sm:$0xff]
    %v246 = vld [vmem:[%s2 + $0x680] sm:$0xff]
    %v247 = vld [vmem:[%s2 + $0x688] sm:$0xff]
    %v248 = vld [vmem:[%s2 + $0x690] sm:$0xff]
    %v249 = vld [vmem:[%s2 + $0x698] sm:$0xff]
    %v250 = vld [vmem:[%s2 + $0x6a0] sm:$0xff]
    %v251 = vld [vmem:[%s2 + $0x6a8] sm:$0xff]
    %v252 = vld [vmem:[%s2 + $0x6b0] sm:$0xff]
    %v253 = vld [vmem:[%s2 + $0x6b8] sm:$0xff]
    %v254 = vld [vmem:[%s2 + $0x6c0] sm:$0xff]
    %v255 = vld [vmem:[%s2 + $0x6c8] sm:$0xff]
    %v256 = vld [vmem:[%s2 + $0x6d0] sm:$0xff]
    %v257 = vld [vmem:[%s2 + $0x6d8] sm:$0xff]
    %v258 = vld [vmem:[%s2 + $0x6e0] sm:$0xff]
    %v259 = vld [vmem:[%s2 + $0x6e8] sm:$0xff]
    %v260 = vld [vmem:[%s2 + $0x6f0] sm:$0xff]
    %v261 = vld [vmem:[%s2 + $0x6f8] sm:$0xff]
    %v262 = vld [vmem:[%s2 + $0x700] sm:$0xff]
    %v263 = vld [vmem:[%s2 + $0x708] sm:$0xff]
    %v264 = vld [vmem:[%s2 + $0x710] sm:$0xff]
    %v265 = vld [vmem:[%s2 + $0x718] sm:$0xff]
    %v266 = vld [vmem:[%s2 + $0x720] sm:$0xff]
    %v267 = vld [vmem:[%s2 + $0x728] sm:$0xff]
    %v268 = vld [vmem:[%s2 + $0x730] sm:$0xff]
    %v269 = vld [vmem:[%s2 + $0x738] sm:$0xff]
    %v270 = vld [vmem:[%s2 + $0x740] sm:$0xff]
    %v271 = vld [vmem:[%s2 + $0x748] sm:$0xff]
    %v272 = vld [vmem:[%s2 + $0x750] sm:$0xff]
    %v273 = vld [vmem:[%s2 + $0x758] sm:$0xff]
    %v274 = vld [vmem:[%s2 + $0x760] sm:$0xff]
    %v275 = vld [vmem:[%s2 + $0x768] sm:$0xff]
    %v276 = vld [vmem:[%s2 + $0x770] sm:$0xff]
    %v277 = vld [vmem:[%s2 + $0x778] sm:$0xff]
    %v278 = vld [vmem:[%s2 + $0x780] sm:$0xff]
    %v279 = vld [vmem:[%s2 + $0x788] sm:$0xff]
    %v280 = vld [vmem:[%s2 + $0x790] sm:$0xff]
    %v281 = vld [vmem:[%s2 + $0x798] sm:$0xff]
    %v282 = vld [vmem:[%s2 + $0x7a0] sm:$0xff]
    %v283 = vld [vmem:[%s2 + $0x7a8] sm:$0xff]
    %v284 = vld [vmem:[%s2 + $0x7b0] sm:$0xff]
    %v285 = vld [vmem:[%s2 + $0x7b8] sm:$0xff]
    %v286 = vld [vmem:[%s2 + $0x7c0] sm:$0xff]
    %v287 = vld [vmem:[%s2 + $0x7c8] sm:$0xff]
    %v288 = vld [vmem:[%s2 + $0x7d0] sm:$0xff]
    %v289 = vld [vmem:[%s2 + $0x7d8] sm:$0xff]
    %v290 = vld [vmem:[%s2 + $0x7e0] sm:$0xff]
    %v291 = vld [vmem:[%s2 + $0x7e8] sm:$0xff]
    %v292 = vld [vmem:[%s2 + $0x7f0] sm:$0xff]
    %v293 = vld [vmem:[%s2 + $0x7f8] sm:$0xff]
    %v294 = vld [vmem:[%s2 + $0x800] sm:$0xff]
    %v295 = vld [vmem:[%s2 + $0x808] sm:$0xff]
    %v296 = vld [vmem:[%s2 + $0x810] sm:$0xff]
    %v297 = vld [vmem:[%s2 + $0x818] sm:$0xff]
    %v298 = vld [vmem:[%s2 + $0x820] sm:$0xff]
    %v299 = vld [vmem:[%s2 + $0x828] sm:$0xff]
    %v300 = vld [vmem:[%s2 + $0x830] sm:$0xff]
    %v301 = vld [vmem:[%s2 + $0x838] sm:$0xff]
    %v302 = vld [vmem:[%s2 + $0x840] sm:$0xff]
    %v303 = vld [vmem:[%s2 + $0x848] sm:$0xff]
    %v304 = vld [vmem:[%s2 + $0x850] sm:$0xff]
    %v305 = vld [vmem:[%s2 + $0x858] sm:$0xff]
    %v306 = vld [vmem:[%s2 + $0x860] sm:$0xff]
    %v307 = vld [vmem:[%s2 + $0x868] sm:$0xff]
    %v308 = vld [vmem:[%s2 + $0x870] sm:$0xff]
    %v309 = vld [vmem:[%s2 + $0x878] sm:$0xff]
    %v310 = vld [vmem:[%s2 + $0x880] sm:$0xff]
    %v311 = vld [vmem:[%s2 + $0x888] sm:$0xff]
    %v312 = vld [vmem:[%s2 + $0x890] sm:$0xff]
    %v313 = vld [vmem:[%s2 + $0x898] sm:$0xff]
    %v314 = vld [vmem:[%s2 + $0x8a0] sm:$0xff]
    %v315 = vld [vmem:[%s2 + $0x8a8] sm:$0xff]
    %v316 = vld [vmem:[%s2 + $0x8b0] sm:$0xff]
    %v317 = vld [vmem:[%s2 + $0x8b8] sm:$0xff]
    %v318 = vld [vmem:[%s2 + $0x8c0] sm:$0xff]
    %v319 = vld [vmem:[%s2 + $0x8c8] sm:$0xff]
    %v320 = vld [vmem:[%s2 + $0x8d0] sm:$0xff]
    %v321 = vld [vmem:[%s2 + $0x8d8] sm:$0xff]
    %v322 = vld [vmem:[%s2 + $0x8e0] sm:$0xff]
    %v323 = vld [vmem:[%s2 + $0x8e8] sm:$0xff]
    %v324 = vld [vmem:[%s2 + $0x8f0] sm:$0xff]
    %v325 = vld [vmem:[%s2 + $0x8f8] sm:$0xff]
    %v326 = vld [vmem:[%s2 + $0x900] sm:$0xff]
    %v327 = vld [vmem:[%s2 + $0x908] sm:$0xff]
    %v328 = vld [vmem:[%s2 + $0x910] sm:$0xff]
    %v329 = vld [vmem:[%s2 + $0x918] sm:$0xff]
    %v330 = vld [vmem:[%s2 + $0x920] sm:$0xff]
    %v331 = vld [vmem:[%s2 + $0x928] sm:$0xff]
    %v332 = vld [vmem:[%s2 + $0x930] sm:$0xff]
    %v333 = vld [vmem:[%s2 + $0x938] sm:$0xff]
    %v334 = vld [vmem:[%s2 + $0x940] sm:$0xff]
    %v335 = vld [vmem:[%s2 + $0x948] sm:$0xff]
    %v336 = vld [vmem:[%s2 + $0x950] sm:$0xff]
    %v337 = vld [vmem:[%s2 + $0x958] sm:$0xff]
    %v338 = vld [vmem:[%s2 + $0x960] sm:$0xff]
    %v339 = vld [vmem:[%s2 + $0x968] sm:$0xff]
    %v340 = vld [vmem:[%s2 + $0x970] sm:$0xff]
    %v341 = vld [vmem:[%s2 + $0x978] sm:$0xff]
    %v342 = vld [vmem:[%s2 + $0x980] sm:$0xff]
    %v343 = vld [vmem:[%s2 + $0x988] sm:$0xff]
    %v344 = vld [vmem:[%s2 + $0x990] sm:$0xff]
    %v345 = vld [vmem:[%s2 + $0x998] sm:$0xff]
    %v346 = vld [vmem:[%s2 + $0x9a0] sm:$0xff]
    %v347 = vld [vmem:[%s2 + $0x9a8] sm:$0xff]
    %v348 = vld [vmem:[%s2 + $0x9b0] sm:$0xff]
    %v349 = vld [vmem:[%s2 + $0x9b8] sm:$0xff]
    %v350 = vld [vmem:[%s2 + $0x9c0] sm:$0xff]
    %v351 = vld [vmem:[%s2 + $0x9c8] sm:$0xff]
    %v352 = vld [vmem:[%s2 + $0x9d0] sm:$0xff]
    %v353 = vld [vmem:[%s2 + $0x9d8] sm:$0xff]
    %v354 = vld [vmem:[%s2 + $0x9e0] sm:$0xff]
    %v355 = vld [vmem:[%s2 + $0x9e8] sm:$0xff]
    %v356 = vld [vmem:[%s2 + $0x9f0] sm:$0xff]
    %v357 = vld [vmem:[%s2 + $0x9f8] sm:$0xff]
    %v358 = vld [vmem:[%s2 + $0xa00] sm:$0xff]
    %v359 = vld [vmem:[%s2 + $0xa08] sm:$0xff]
    %v360 = vld [vmem:[%s2 + $0xa10] sm:$0xff]
    %v361 = vld [vmem:[%s2 + $0xa18] sm:$0xff]
    %v362 = vld [vmem:[%s2 + $0xa20] sm:$0xff]
    %v363 = vld [vmem:[%s2 + $0xa28] sm:$0xff]
    %v364 = vld [vmem:[%s2 + $0xa30] sm:$0xff]
    %v365 = vld [vmem:[%s2 + $0xa38] sm:$0xff]
    %v366 = vld [vmem:[%s2 + $0xa40] sm:$0xff]
    %v367 = vld [vmem:[%s2 + $0xa48] sm:$0xff]
    %v368 = vld [vmem:[%s2 + $0xa50] sm:$0xff]
    %v369 = vld [vmem:[%s2 + $0xa58] sm:$0xff]
    %v370 = vld [vmem:[%s2 + $0xa60] sm:$0xff]
    %v371 = vld [vmem:[%s2 + $0xa68] sm:$0xff]
    %v372 = vld [vmem:[%s2 + $0xa70] sm:$0xff]
    %v373 = vld [vmem:[%s2 + $0xa78] sm:$0xff]
    %v374 = vld [vmem:[%s2 + $0xa80] sm:$0xff]
    %v375 = vld [vmem:[%s2 + $0xa88] sm:$0xff]
    %v376 = vld [vmem:[%s2 + $0xa90] sm:$0xff]
    %v377 = vld [vmem:[%s2 + $0xa98] sm:$0xff]
    %v378 = vld [vmem:[%s2 + $0xaa0] sm:$0xff]
    %v379 = vld [vmem:[%s2 + $0xaa8] sm:$0xff]
    %v380 = vld [vmem:[%s2 + $0xab0] sm:$0xff]
    %v381 = vld [vmem:[%s2 + $0xab8] sm:$0xff]
    %v382 = vld [vmem:[%s2 + $0xac0] sm:$0xff]
    %v383 = vld [vmem:[%s2 + $0xac8] sm:$0xff]
    %v384 = vld [vmem:[%s2 + $0xad0] sm:$0xff]
    %v385 = vld [vmem:[%s2 + $0xad8] sm:$0xff]
    %v386 = vld [vmem:[%s2 + $0xae0] sm:$0xff]
    %v387 = vld [vmem:[%s2 + $0xae8] sm:$0xff]
    %v388 = vld [vmem:[%s2 + $0xaf0] sm:$0xff]
    %v389 = vld [vmem:[%s2 + $0xaf8] sm:$0xff]
    %v390 = vld [vmem:[%s2 + $0xb00] sm:$0xff]
    %v391 = vld [vmem:[%s2 + $0xb08] sm:$0xff]
    %v392 = vld [vmem:[%s2 + $0xb10] sm:$0xff]
    %v393 = vld [vmem:[%s2 + $0xb18] sm:$0xff]
    %v394 = vld [vmem:[%s2 + $0xb20] sm:$0xff]
    %v395 = vld [vmem:[%s2 + $0xb28] sm:$0xff]
    %v396 = vld [vmem:[%s2 + $0xb30] sm:$0xff]
    %v397 = vld [vmem:[%s2 + $0xb38] sm:$0xff]
    %v398 = vld [vmem:[%s2 + $0xb40] sm:$0xff]
    %v399 = vld [vmem:[%s2 + $0xb48] sm:$0xff]
    %v400 = vld [vmem:[%s2 + $0xb50] sm:$0xff]
    %v401 = vld [vmem:[%s2 + $0xb58] sm:$0xff]
    %v402 = vld [vmem:[%s2 + $0xb60] sm:$0xff]
    %v403 = vld [vmem:[%s2 + $0xb68] sm:$0xff]
    %v404 = vld [vmem:[%s2 + $0xb70] sm:$0xff]
    %v405 = vld [vmem:[%s2 + $0xb78] sm:$0xff]
    %v406 = vld [vmem:[%s2 + $0xb80] sm:$0xff]
    %v407 = vld [vmem:[%s2 + $0xb88] sm:$0xff]
    %v408 = vld [vmem:[%s2 + $0xb90] sm:$0xff]
    %v409 = vld [vmem:[%s2 + $0xb98] sm:$0xff]
    %v410 = vld [vmem:[%s2 + $0xba0] sm:$0xff]
    %v411 = vld [vmem:[%s2 + $0xba8] sm:$0xff]
    %v412 = vld [vmem:[%s2 + $0xbb0] sm:$0xff]
    %v413 = vld [vmem:[%s2 + $0xbb8] sm:$0xff]
    %v414 = vld [vmem:[%s2 + $0xbc0] sm:$0xff]
    %v415 = vld [vmem:[%s2 + $0xbc8] sm:$0xff]
    %v416 = vld [vmem:[%s2 + $0xbd0] sm:$0xff]
    %v417 = vld [vmem:[%s2 + $0xbd8] sm:$0xff]
    %v418 = vld [vmem:[%s2 + $0xbe0] sm:$0xff]
    %v419 = vld [vmem:[%s2 + $0xbe8] sm:$0xff]
    %v420 = vld [vmem:[%s2 + $0xbf0] sm:$0xff]
    %v421 = vld [vmem:[%s2 + $0xbf8] sm:$0xff]
    %v422 = vld [vmem:[%s2 + $0xc00] sm:$0xff]
    %v423 = vld [vmem:[%s2 + $0xc08] sm:$0xff]
    %v424 = vld [vmem:[%s2 + $0xc10] sm:$0xff]
    %v425 = vld [vmem:[%s2 + $0xc18] sm:$0xff]
    %v426 = vld [vmem:[%s2 + $0xc20] sm:$0xff]
    %v427 = vld [vmem:[%s2 + $0xc28] sm:$0xff]
    %v428 = vld [vmem:[%s2 + $0xc30] sm:$0xff]
    %v429 = vld [vmem:[%s2 + $0xc38] sm:$0xff]
    %v430 = vld [vmem:[%s2 + $0xc40] sm:$0xff]
    %v431 = vld [vmem:[%s2 + $0xc48] sm:$0xff]
    %v432 = vld [vmem:[%s2 + $0xc50] sm:$0xff]
    %v433 = vld [vmem:[%s2 + $0xc58] sm:$0xff]
    %v434 = vld [vmem:[%s2 + $0xc60] sm:$0xff]
    %v435 = vld [vmem:[%s2 + $0xc68] sm:$0xff]
    %v436 = vld [vmem:[%s2 + $0xc70] sm:$0xff]
    %v437 = vld [vmem:[%s2 + $0xc78] sm:$0xff]
    %v438 = vld [vmem:[%s2 + $0xc80] sm:$0xff]
    %v439 = vld [vmem:[%s2 + $0xc88] sm:$0xff]
    %v440 = vld [vmem:[%s2 + $0xc90] sm:$0xff]
    %v441 = vld [vmem:[%s2 + $0xc98] sm:$0xff]
    %v442 = vld [vmem:[%s2 + $0xca0] sm:$0xff]
    %v443 = vld [vmem:[%s2 + $0xca8] sm:$0xff]
    %v444 = vld [vmem:[%s2 + $0xcb0] sm:$0xff]
    %v445 = vld [vmem:[%s2 + $0xcb8] sm:$0xff]
    %v446 = vld [vmem:[%s2 + $0xcc0] sm:$0xff]
    %v447 = vld [vmem:[%s2 + $0xcc8] sm:$0xff]
    %v448 = vld [vmem:[%s2 + $0xcd0] sm:$0xff]
    %v449 = vld [vmem:[%s2 + $0xcd8] sm:$0xff]
    %v450 = vld [vmem:[%s2 + $0xce0] sm:$0xff]
    %v451 = vld [vmem:[%s2 + $0xce8] sm:$0xff]
    %v452 = vld [vmem:[%s2 + $0xcf0] sm:$0xff]
    %v453 = vld [vmem:[%s2 + $0xcf8] sm:$0xff]
    %v454 = vld [vmem:[%s2 + $0xd00] sm:$0xff]
    %v455 = vld [vmem:[%s2 + $0xd08] sm:$0xff]
    %v456 = vld [vmem:[%s2 + $0xd10] sm:$0xff]
    %v457 = vld [vmem:[%s2 + $0xd18] sm:$0xff]
    %v458 = vld [vmem:[%s2 + $0xd20] sm:$0xff]
    %v459 = vld [vmem:[%s2 + $0xd28] sm:$0xff]
    %v460 = vld [vmem:[%s2 + $0xd30] sm:$0xff]
    %v461 = vld [vmem:[%s2 + $0xd38] sm:$0xff]
    %v462 = vld [vmem:[%s2 + $0xd40] sm:$0xff]
    %v463 = vld [vmem:[%s2 + $0xd48] sm:$0xff]
    %v464 = vld [vmem:[%s2 + $0xd50] sm:$0xff]
    %v465 = vld [vmem:[%s2 + $0xd58] sm:$0xff]
    %v466 = vld [vmem:[%s2 + $0xd60] sm:$0xff]
    %v467 = vld [vmem:[%s2 + $0xd68] sm:$0xff]
    %v468 = vld [vmem:[%s2 + $0xd70] sm:$0xff]
    %v469 = vld [vmem:[%s2 + $0xd78] sm:$0xff]
    %v470 = vld [vmem:[%s2 + $0xd80] sm:$0xff]
    %v471 = vld [vmem:[%s2 + $0xd88] sm:$0xff]
    %v472 = vld [vmem:[%s2 + $0xd90] sm:$0xff]
    %v473 = vld [vmem:[%s2 + $0xd98] sm:$0xff]
    %v474 = vld [vmem:[%s2 + $0xda0] sm:$0xff]
    %v475 = vld [vmem:[%s2 + $0xda8] sm:$0xff]
    %v476 = vld [vmem:[%s2 + $0xdb0] sm:$0xff]
    %v477 = vld [vmem:[%s2 + $0xdb8] sm:$0xff]
    %v478 = vld [vmem:[%s2 + $0xdc0] sm:$0xff]
    %v479 = vld [vmem:[%s2 + $0xdc8] sm:$0xff]
    %v480 = vld [vmem:[%s2 + $0xdd0] sm:$0xff]
    %v481 = vld [vmem:[%s2 + $0xdd8] sm:$0xff]
    %v482 = vld [vmem:[%s2 + $0xde0] sm:$0xff]
    %v483 = vld [vmem:[%s2 + $0xde8] sm:$0xff]
    %v484 = vld [vmem:[%s2 + $0xdf0] sm:$0xff]
    %v485 = vld [vmem:[%s2 + $0xdf8] sm:$0xff]
    %v486 = vld [vmem:[%s2 + $0xe00] sm:$0xff]
    %v487 = vld [vmem:[%s2 + $0xe08] sm:$0xff]
    %v488 = vld [vmem:[%s2 + $0xe10] sm:$0xff]
    %v489 = vld [vmem:[%s2 + $0xe18] sm:$0xff]
    %v490 = vld [vmem:[%s2 + $0xe20] sm:$0xff]
    %v491 = vld [vmem:[%s2 + $0xe28] sm:$0xff]
    %v492 = vld [vmem:[%s2 + $0xe30] sm:$0xff]
    %v493 = vld [vmem:[%s2 + $0xe38] sm:$0xff]
    %v494 = vld [vmem:[%s2 + $0xe40] sm:$0xff]
    %v495 = vld [vmem:[%s2 + $0xe48] sm:$0xff]
    %v496 = vld [vmem:[%s2 + $0xe50] sm:$0xff]
    %v497 = vld [vmem:[%s2 + $0xe58] sm:$0xff]
    %v498 = vld [vmem:[%s2 + $0xe60] sm:$0xff]
    %v499 = vld [vmem:[%s2 + $0xe68] sm:$0xff]
    %v500 = vld [vmem:[%s2 + $0xe70] sm:$0xff]
    %v501 = vld [vmem:[%s2 + $0xe78] sm:$0xff]
    %v502 = vld [vmem:[%s2 + $0xe80] sm:$0xff]
    %v503 = vld [vmem:[%s2 + $0xe88] sm:$0xff]
    %v504 = vld [vmem:[%s2 + $0xe90] sm:$0xff]
    %v505 = vld [vmem:[%s2 + $0xe98] sm:$0xff]
    %v506 = vld [vmem:[%s2 + $0xea0] sm:$0xff]
    %v507 = vld [vmem:[%s2 + $0xea8] sm:$0xff]
    %v508 = vld [vmem:[%s2 + $0xeb0] sm:$0xff]
    %v509 = vld [vmem:[%s2 + $0xeb8] sm:$0xff]
    %v510 = vld [vmem:[%s2 + $0xec0] sm:$0xff]
    %v511 = vld [vmem:[%s2 + $0xec8] sm:$0xff]
    %v512 = vld [vmem:[%s2 + $0xed0] sm:$0xff]
    %v513 = vld [vmem:[%s2 + $0xed8] sm:$0xff]
    %v514 = vld [vmem:[%s2 + $0xee0] sm:$0xff]
    %v515 = vld [vmem:[%s2 + $0xee8] sm:$0xff]
    %v516 = vld [vmem:[%s2 + $0xef0] sm:$0xff]
    %v517 = vld [vmem:[%s2 + $0xef8] sm:$0xff]
    %v518 = vld [vmem:[%s2 + $0xf00] sm:$0xff]
    %v519 = vld [vmem:[%s2 + $0xf08] sm:$0xff]
    %v520 = vld [vmem:[%s2 + $0xf10] sm:$0xff]
    %v521 = vld [vmem:[%s2 + $0xf18] sm:$0xff]
    %v522 = vld [vmem:[%s2 + $0xf20] sm:$0xff]
    %v523 = vld [vmem:[%s2 + $0xf28] sm:$0xff]
    %v524 = vld [vmem:[%s2 + $0xf30] sm:$0xff]
    %v525 = vld [vmem:[%s2 + $0xf38] sm:$0xff]
    %v526 = vld [vmem:[%s2 + $0xf40] sm:$0xff]
    %v527 = vld [vmem:[%s2 + $0xf48] sm:$0xff]
    %v528 = vld [vmem:[%s2 + $0xf50] sm:$0xff]
    %v529 = vld [vmem:[%s2 + $0xf58] sm:$0xff]
    %v530 = vld [vmem:[%s2 + $0xf60] sm:$0xff]
    %v531 = vld [vmem:[%s2 + $0xf68] sm:$0xff]
    %v532 = vld [vmem:[%s2 + $0xf70] sm:$0xff]
    %v533 = vld [vmem:[%s2 + $0xf78] sm:$0xff]
    %v534 = vld [vmem:[%s2 + $0xf80] sm:$0xff]
    %v535 = vld [vmem:[%s2 + $0xf88] sm:$0xff]
    %v536 = vld [vmem:[%s2 + $0xf90] sm:$0xff]
    %v537 = vld [vmem:[%s2 + $0xf98] sm:$0xff]
    %v538 = vld [vmem:[%s2 + $0xfa0] sm:$0xff]
    %v539 = vld [vmem:[%s2 + $0xfa8] sm:$0xff]
    %v540 = vld [vmem:[%s2 + $0xfb0] sm:$0xff]
    %v541 = vld [vmem:[%s2 + $0xfb8] sm:$0xff]
    %v542 = vld [vmem:[%s2 + $0xfc0] sm:$0xff]
    %v543 = vld [vmem:[%s2 + $0xfc8] sm:$0xff]
    %v544 = vld [vmem:[%s2 + $0xfd0] sm:$0xff]
    %v545 = vld [vmem:[%s2 + $0xfd8] sm:$0xff]
    %v546 = vld [vmem:[%s2 + $0xfe0] sm:$0xff]
    %v547 = vld [vmem:[%s2 + $0xfe8] sm:$0xff]
    %v548 = vld [vmem:[%s2 + $0xff0] sm:$0xff]
    %v549 = vld [vmem:[%s2 + $0xff8] sm:$0xff]
    %v550 = vld [vmem:[%s2 + $0x1000] sm:$0xff]
    %v551 = vld [vmem:[%s2 + $0x1008] sm:$0xff]
    %v552 = vld [vmem:[%s2 + $0x1010] sm:$0xff]
    %v553 = vld [vmem:[%s2 + $0x1018] sm:$0xff]
    %v554 = vld [vmem:[%s2 + $0x1020] sm:$0xff]
    %v555 = vld [vmem:[%s2 + $0x1028] sm:$0xff]
    %v556 = vld [vmem:[%s2 + $0x1030] sm:$0xff]
    %v557 = vld [vmem:[%s2 + $0x1038] sm:$0xff]
    %v558 = vld [vmem:[%s2 + $0x1040] sm:$0xff]
    %v559 = vld [vmem:[%s2 + $0x1048] sm:$0xff]
    %v560 = vld [vmem:[%s2 + $0x1050] sm:$0xff]
    %v561 = vld [vmem:[%s2 + $0x1058] sm:$0xff]
    %v562 = vld [vmem:[%s2 + $0x1060] sm:$0xff]
    %v563 = vld [vmem:[%s2 + $0x1068] sm:$0xff]
    %v564 = vld [vmem:[%s2 + $0x1070] sm:$0xff]
    %v565 = vld [vmem:[%s2 + $0x1078] sm:$0xff]
    %v566 = vld [vmem:[%s2 + $0x1080] sm:$0xff]
    %v567 = vld [vmem:[%s2 + $0x1088] sm:$0xff]
    %v568 = vld [vmem:[%s2 + $0x1090] sm:$0xff]
    %v569 = vld [vmem:[%s2 + $0x1098] sm:$0xff]
    %v570 = vld [vmem:[%s2 + $0x10a0] sm:$0xff]
    %v571 = vld [vmem:[%s2 + $0x10a8] sm:$0xff]
    %v572 = vld [vmem:[%s2 + $0x10b0] sm:$0xff]
    %v573 = vld [vmem:[%s2 + $0x10b8] sm:$0xff]
    %v574 = vld [vmem:[%s2 + $0x10c0] sm:$0xff]
    %v575 = vld [vmem:[%s2 + $0x10c8] sm:$0xff]
    %v576 = vld [vmem:[%s2 + $0x10d0] sm:$0xff]
    %v577 = vld [vmem:[%s2 + $0x10d8] sm:$0xff]
    %v578 = vld [vmem:[%s2 + $0x10e0] sm:$0xff]
    %v579 = vld [vmem:[%s2 + $0x10e8] sm:$0xff]
    %v580 = vld [vmem:[%s2 + $0x10f0] sm:$0xff]
    %v581 = vld [vmem:[%s2 + $0x10f8] sm:$0xff]
    %v582 = vld [vmem:[%s2 + $0x1100] sm:$0xff]
    %v583 = vld [vmem:[%s2 + $0x1108] sm:$0xff]
    %v584 = vld [vmem:[%s2 + $0x1110] sm:$0xff]
    %v585 = vld [vmem:[%s2 + $0x1118] sm:$0xff]
    %v586 = vld [vmem:[%s2 + $0x1120] sm:$0xff]
    %v587 = vld [vmem:[%s2 + $0x1128] sm:$0xff]
    %v588 = vld [vmem:[%s2 + $0x1130] sm:$0xff]
    %v589 = vld [vmem:[%s2 + $0x1138] sm:$0xff]
    %v590 = vld [vmem:[%s2 + $0x1140] sm:$0xff]
    %v591 = vld [vmem:[%s2 + $0x1148] sm:$0xff]
    %v592 = vld [vmem:[%s2 + $0x1150] sm:$0xff]
    %v593 = vld [vmem:[%s2 + $0x1158] sm:$0xff]
    %v594 = vld [vmem:[%s2 + $0x1160] sm:$0xff]
    %v595 = vld [vmem:[%s2 + $0x1168] sm:$0xff]
    %v596 = vld [vmem:[%s2 + $0x1170] sm:$0xff]
    %v597 = vld [vmem:[%s2 + $0x1178] sm:$0xff]
    %v598 = vld [vmem:[%s2 + $0x1180] sm:$0xff]
    %v599 = vld [vmem:[%s2 + $0x1188] sm:$0xff]
    %v600 = vld [vmem:[%s2 + $0x1190] sm:$0xff]
    %v601 = vld [vmem:[%s2 + $0x1198] sm:$0xff]
    %v602 = vld [vmem:[%s2 + $0x11a0] sm:$0xff]
    %v603 = vld [vmem:[%s2 + $0x11a8] sm:$0xff]
    %v604 = vld [vmem:[%s2 + $0x11b0] sm:$0xff]
    %v605 = vld [vmem:[%s2 + $0x11b8] sm:$0xff]
    %v606 = vld [vmem:[%s2 + $0x11c0] sm:$0xff]
    %v607 = vld [vmem:[%s2 + $0x11c8] sm:$0xff]
    %v608 = vld [vmem:[%s2 + $0x11d0] sm:$0xff]
    %v609 = vld [vmem:[%s2 + $0x11d8] sm:$0xff]
    %v610 = vld [vmem:[%s2 + $0x11e0] sm:$0xff]
    %v611 = vld [vmem:[%s2 + $0x11e8] sm:$0xff]
    %v612 = vld [vmem:[%s2 + $0x11f0] sm:$0xff]
    %v613 = vld [vmem:[%s2 + $0x11f8] sm:$0xff]
    %v614 = vld [vmem:[%s2 + $0x1200] sm:$0xff]
    %v615 = vld [vmem:[%s2 + $0x1208] sm:$0xff]
    %v616 = vld [vmem:[%s2 + $0x1210] sm:$0xff]
    %v617 = vld [vmem:[%s2 + $0x1218] sm:$0xff]
    %v618 = vld [vmem:[%s2 + $0x1220] sm:$0xff]
    %v619 = vld [vmem:[%s2 + $0x1228] sm:$0xff]
    %v620 = vld [vmem:[%s2 + $0x1230] sm:$0xff]
    %v621 = vld [vmem:[%s2 + $0x1238] sm:$0xff]
    %v622 = vld [vmem:[%s2 + $0x1240] sm:$0xff]
    %v623 = vld [vmem:[%s2 + $0x1248] sm:$0xff]
    %v624 = vld [vmem:[%s2 + $0x1250] sm:$0xff]
    %v625 = vld [vmem:[%s2 + $0x1258] sm:$0xff]
    %v626 = vld [vmem:[%s2 + $0x1260] sm:$0xff]
    %v627 = vld [vmem:[%s2 + $0x1268] sm:$0xff]
    %v628 = vld [vmem:[%s2 + $0x1270] sm:$0xff]
    %v629 = vld [vmem:[%s2 + $0x1278] sm:$0xff]
    %v630 = vld [vmem:[%s2 + $0x1280] sm:$0xff]
    %v631 = vld [vmem:[%s2 + $0x1288] sm:$0xff]
    %v632 = vld [vmem:[%s2 + $0x1290] sm:$0xff]
    %v633 = vld [vmem:[%s2 + $0x1298] sm:$0xff]
    %v634 = vld [vmem:[%s2 + $0x12a0] sm:$0xff]
    %v635 = vld [vmem:[%s2 + $0x12a8] sm:$0xff]
    %v636 = vld [vmem:[%s2 + $0x12b0] sm:$0xff]
    %v637 = vld [vmem:[%s2 + $0x12b8] sm:$0xff]
    %v638 = vld [vmem:[%s2 + $0x12c0] sm:$0xff]
    %v639 = vld [vmem:[%s2 + $0x12c8] sm:$0xff]
    %v640 = vld [vmem:[%s2 + $0x12d0] sm:$0xff]
    %v641 = vld [vmem:[%s2 + $0x12d8] sm:$0xff]
    %v642 = vld [vmem:[%s2 + $0x12e0] sm:$0xff]
    %v643 = vld [vmem:[%s2 + $0x12e8] sm:$0xff]
    %v644 = vld [vmem:[%s2 + $0x12f0] sm:$0xff]
    %v645 = vld [vmem:[%s2 + $0x12f8] sm:$0xff]
    %v646 = vld [vmem:[%s2 + $0x1300] sm:$0xff]
    %v647 = vld [vmem:[%s2 + $0x1308] sm:$0xff]
    %v648 = vld [vmem:[%s2 + $0x1310] sm:$0xff]
    %v649 = vld [vmem:[%s2 + $0x1318] sm:$0xff]
    %v650 = vld [vmem:[%s2 + $0x1320] sm:$0xff]
    %v651 = vld [vmem:[%s2 + $0x1328] sm:$0xff]
    %v652 = vld [vmem:[%s2 + $0x1330] sm:$0xff]
    %v653 = vld [vmem:[%s2 + $0x1338] sm:$0xff]
    %v654 = vld [vmem:[%s2 + $0x1340] sm:$0xff]
    %v655 = vld [vmem:[%s2 + $0x1348] sm:$0xff]
    %v656 = vld [vmem:[%s2 + $0x1350] sm:$0xff]
    %v657 = vld [vmem:[%s2 + $0x1358] sm:$0xff]
    %v658 = vld [vmem:[%s2 + $0x1360] sm:$0xff]
    %v659 = vld [vmem:[%s2 + $0x1368] sm:$0xff]
    %v660 = vld [vmem:[%s2 + $0x1370] sm:$0xff]
    %v661 = vld [vmem:[%s2 + $0x1378] sm:$0xff]
    %v662 = vld [vmem:[%s2 + $0x1380] sm:$0xff]
    %v663 = vld [vmem:[%s2 + $0x1388] sm:$0xff]
    %v664 = vld [vmem:[%s2 + $0x1390] sm:$0xff]
    %v665 = vld [vmem:[%s2 + $0x1398] sm:$0xff]
    %v666 = vld [vmem:[%s2 + $0x13a0] sm:$0xff]
    %v667 = vld [vmem:[%s2 + $0x13a8] sm:$0xff]
    %v668 = vld [vmem:[%s2 + $0x13b0] sm:$0xff]
    %v669 = vld [vmem:[%s2 + $0x13b8] sm:$0xff]
    %v670 = vld [vmem:[%s2 + $0x13c0] sm:$0xff]
    %v671 = vld [vmem:[%s2 + $0x13c8] sm:$0xff]
    %v672 = vld [vmem:[%s2 + $0x13d0] sm:$0xff]
    %v673 = vld [vmem:[%s2 + $0x13d8] sm:$0xff]
    %v674 = vld [vmem:[%s2 + $0x13e0] sm:$0xff]
    %v675 = vld [vmem:[%s2 + $0x13e8] sm:$0xff]
    %v676 = vld [vmem:[%s2 + $0x13f0] sm:$0xff]
    %v677 = vld [vmem:[%s2 + $0x13f8] sm:$0xff]
    %v678 = vld [vmem:[%s2 + $0x1400] sm:$0xff]
    %v679 = vld [vmem:[%s2 + $0x1408] sm:$0xff]
    %v680 = vld [vmem:[%s2 + $0x1410] sm:$0xff]
    %v681 = vld [vmem:[%s2 + $0x1418] sm:$0xff]
    %v682 = vld [vmem:[%s2 + $0x1420] sm:$0xff]
    %v683 = vld [vmem:[%s2 + $0x1428] sm:$0xff]
    %v684 = vld [vmem:[%s2 + $0x1430] sm:$0xff]
    %v685 = vld [vmem:[%s2 + $0x1438] sm:$0xff]
    %v686 = vld [vmem:[%s2 + $0x1440] sm:$0xff]
    %v687 = vld [vmem:[%s2 + $0x1448] sm:$0xff]
    %v688 = vld [vmem:[%s2 + $0x1450] sm:$0xff]
    %v689 = vld [vmem:[%s2 + $0x1458] sm:$0xff]
    %v690 = vld [vmem:[%s2 + $0x1460] sm:$0xff]
    %v691 = vld [vmem:[%s2 + $0x1468] sm:$0xff]
    %v692 = vld [vmem:[%s2 + $0x1470] sm:$0xff]
    %v693 = vld [vmem:[%s2 + $0x1478] sm:$0xff]
    %v694 = vld [vmem:[%s2 + $0x1480] sm:$0xff]
    %v695 = vld [vmem:[%s2 + $0x1488] sm:$0xff]
    %v696 = vld [vmem:[%s2 + $0x1490] sm:$0xff]
    %v697 = vld [vmem:[%s2 + $0x1498] sm:$0xff]
    %v698 = vld [vmem:[%s2 + $0x14a0] sm:$0xff]
    %v699 = vld [vmem:[%s2 + $0x14a8] sm:$0xff]
    %v700 = vld [vmem:[%s2 + $0x14b0] sm:$0xff]
    %v701 = vld [vmem:[%s2 + $0x14b8] sm:$0xff]
    %v702 = vld [vmem:[%s2 + $0x14c0] sm:$0xff]
    %v703 = vld [vmem:[%s2 + $0x14c8] sm:$0xff]
    %v704 = vld [vmem:[%s2 + $0x14d0] sm:$0xff]
    %v705 = vld [vmem:[%s2 + $0x14d8] sm:$0xff]
    %v706 = vld [vmem:[%s2 + $0x14e0] sm:$0xff]
    %v707 = vld [vmem:[%s2 + $0x14e8] sm:$0xff]
    %v708 = vld [vmem:[%s2 + $0x14f0] sm:$0xff]
    %v709 = vld [vmem:[%s2 + $0x14f8] sm:$0xff]
    %v710 = vld [vmem:[%s1] sm:$0x3]
    %v711 = vld [vmem:[%s3] sm:$0x3]
    %vm712 = vcmask 15360
    %v714 = vsel %vm712, %v710, 0
    %vm716 = vcmask 1041408
    %v718 = vsel %vm716, %v711, 0
    %720 = vmatpush.msra.mxu0 0.0
    %721 = vmatpush.msra.mxu0 0.0
    %722 = vmatpush.msra.mxu0 0.0
    %723 = vmatpush.msra.mxu0 0.0
    %724 = vmatpush.msra.mxu0 0.0
    %725 = vmatpush.msra.mxu0 0.0
    %726 = vmatpush.msra.mxu0 0.0
    %727 = vmatpush.msra.mxu0 0.0
    %728 = vmatpush.msra.mxu0 0.0
    %729 = vmatpush.msra.mxu0 0.0
    %730 = vmatpush.msra.mxu0 0.0
    %731 = vmatpush.msra.mxu0 0.0
    %732 = vmatpush.msra.mxu0 0.0
    %733 = vmatpush.msra.mxu0 0.0
    %734 = vmatpush.msra.mxu0 0.0
    %735 = vmatpush.msra.mxu0 %v718
    %736 = vmatmul.f32.gmra.mxu0 %v714
    %v737 = vpop.f32.mrf.mxu0
    %v738 = vadd.f32 0.0, %v737
    %739 = vdwg.mxu0
    %751 = vst [vmem:[#allocation1] ss:$4 sm:$0xff] %v27
    %s752 = scalar_lea.vmem [#allocation1], 32
    %753 = vst [vmem:[%s752] ss:$4 sm:$0xff] %v28
    %v754 = vld.sshfl [vmem:[#allocation1] sm:$0xff pattern:$0x73625140]
    %v755 = vld.sshfl [vmem:[#allocation1 + $0x8] sm:$0xff pattern:$0x73625140]
    %v756 = vld.sshfl [vmem:[#allocation1 + $0x10] sm:$0xff pattern:$0x73625140]
    %v757 = vld.sshfl [vmem:[#allocation1 + $0x18] sm:$0xff pattern:$0x73625140]
    %v758 = vld.sshfl [vmem:[#allocation1 + $0x20] sm:$0xff pattern:$0x73625140]
    %v759 = vld.sshfl [vmem:[#allocation1 + $0x28] sm:$0xff pattern:$0x73625140]
    %v760 = vld.sshfl [vmem:[#allocation1 + $0x30] sm:$0xff pattern:$0x73625140]
    %v761 = vld.sshfl [vmem:[#allocation1 + $0x38] sm:$0xff pattern:$0x73625140]
    %762 = vst [vmem:[#allocation1] ss:$4 sm:$0xff] %v29
    %763 = vst [vmem:[%s752] ss:$4 sm:$0xff] %v30
    %v764 = vld.sshfl [vmem:[#allocation1] sm:$0xff pattern:$0x73625140]
    %v765 = vld.sshfl [vmem:[#allocation1 + $0x8] sm:$0xff pattern:$0x73625140]
    %v766 = vld.sshfl [vmem:[#allocation1 + $0x10] sm:$0xff pattern:$0x73625140]
    %v767 = vld.sshfl [vmem:[#allocation1 + $0x18] sm:$0xff pattern:$0x73625140]
    %v768 = vld.sshfl [vmem:[#allocation1 + $0x20] sm:$0xff pattern:$0x73625140]
    %v769 = vld.sshfl [vmem:[#allocation1 + $0x28] sm:$0xff pattern:$0x73625140]
    %v770 = vld.sshfl [vmem:[#allocation1 + $0x30] sm:$0xff pattern:$0x73625140]
    %v771 = vld.sshfl [vmem:[#allocation1 + $0x38] sm:$0xff pattern:$0x73625140]
    %772 = vst [vmem:[#allocation1] ss:$4 sm:$0xff] %v31
    %773 = vst [vmem:[%s752] ss:$4 sm:$0xff] %v32
    %v774 = vld.sshfl [vmem:[#allocation1] sm:$0xff pattern:$0x73625140]
    %v775 = vld.sshfl [vmem:[#allocation1 + $0x8] sm:$0xff pattern:$0x73625140]
    %v776 = vld.sshfl [vmem:[#allocation1 + $0x10] sm:$0xff pattern:$0x73625140]
    %v777 = vld.sshfl [vmem:[#allocation1 + $0x18] sm:$0xff pattern:$0x73625140]
    %v778 = vld.sshfl [vmem:[#allocation1 + $0x20] sm:$0xff pattern:$0x73625140]
    %v779 = vld.sshfl [vmem:[#allocation1 + $0x28] sm:$0xff pattern:$0x73625140]
    %v780 = vld.sshfl [vmem:[#allocation1 + $0x30] sm:$0xff pattern:$0x73625140]
    %v781 = vld.sshfl [vmem:[#allocation1 + $0x38] sm:$0xff pattern:$0x73625140]
    %782 = vst [vmem:[#allocation1] ss:$4 sm:$0xff] %v33
    %783 = vst [vmem:[%s752] ss:$4 sm:$0xff] %v34
    %v784 = vld.sshfl [vmem:[#allocation1] sm:$0xff pattern:$0x73625140]
    %v785 = vld.sshfl [vmem:[#allocation1 + $0x8] sm:$0xff pattern:$0x73625140]
    %v786 = vld.sshfl [vmem:[#allocation1 + $0x10] sm:$0xff pattern:$0x73625140]
    %v787 = vld.sshfl [vmem:[#allocation1 + $0x18] sm:$0xff pattern:$0x73625140]
    %v788 = vld.sshfl [vmem:[#allocation1 + $0x20] sm:$0xff pattern:$0x73625140]
    %v789 = vld.sshfl [vmem:[#allocation1 + $0x28] sm:$0xff pattern:$0x73625140]
    %v790 = vld.sshfl [vmem:[#allocation1 + $0x30] sm:$0xff pattern:$0x73625140]
    %v791 = vld.sshfl [vmem:[#allocation1 + $0x38] sm:$0xff pattern:$0x73625140]
    %792 = vst [vmem:[#allocation1] ss:$4 sm:$0xff] %v35
    %793 = vst [vmem:[%s752] ss:$4 sm:$0xff] %v36
    %v794 = vld.sshfl [vmem:[#allocation1] sm:$0xff pattern:$0x73625140]
    %v795 = vld.sshfl [vmem:[#allocation1 + $0x8] sm:$0xff pattern:$0x73625140]
    %v796 = vld.sshfl [vmem:[#allocation1 + $0x10] sm:$0xff pattern:$0x73625140]
    %v797 = vld.sshfl [vmem:[#allocation1 + $0x18] sm:$0xff pattern:$0x73625140]
    %v798 = vld.sshfl [vmem:[#allocation1 + $0x20] sm:$0xff pattern:$0x73625140]
    %v799 = vld.sshfl [vmem:[#allocation1 + $0x28] sm:$0xff pattern:$0x73625140]
    %v800 = vld.sshfl [vmem:[#allocation1 + $0x30] sm:$0xff pattern:$0x73625140]
    %v801 = vld.sshfl [vmem:[#allocation1 + $0x38] sm:$0xff pattern:$0x73625140]
    %802 = vst [vmem:[#allocation1] ss:$4 sm:$0xff] %v37
    %v803 = vld.sshfl [vmem:[#allocation1] sm:$0xff pattern:$0x73625140]
    %v804 = vld.sshfl [vmem:[#allocation1 + $0x8] sm:$0xff pattern:$0x73625140]
    %847 = vmatpush.msra.mxu0 %v53
    %848 = vmatpush.msra.mxu0 %v52
    %849 = vmatpush.msra.mxu0 %v51
    %850 = vmatpush.msra.mxu0 %v50
    %851 = vmatpush.msra.mxu0 %v49
    %852 = vmatpush.msra.mxu0 %v48
    %853 = vmatpush.msra.mxu0 %v47
    %854 = vmatpush.msra.mxu0 %v46
    %855 = vmatpush.msra.mxu0 %v45
    %856 = vmatpush.msra.mxu0 %v44
    %857 = vmatpush.msra.mxu0 %v43
    %858 = vmatpush.msra.mxu0 %v42
    %859 = vmatpush.msra.mxu0 %v41
    %860 = vmatpush.msra.mxu0 %v40
    %861 = vmatpush.msra.mxu0 %v39
    %862 = vmatpush.msra.mxu0 %v38
    %863 = vmatmul.f32.gmra.mxu0 %v754
    %v864 = vpop.f32.mrf.mxu0
    %v865 = vadd.f32 %v738, %v864
    %866 = vdwg.mxu0
    %867 = vmatpush.msra.mxu0 %v69
    %868 = vmatpush.msra.mxu0 %v68
    %869 = vmatpush.msra.mxu0 %v67
    %870 = vmatpush.msra.mxu0 %v66
    %871 = vmatpush.msra.mxu0 %v65
    %872 = vmatpush.msra.mxu0 %v64
    %873 = vmatpush.msra.mxu0 %v63
    %874 = vmatpush.msra.mxu0 %v62
    %875 = vmatpush.msra.mxu0 %v61
    %876 = vmatpush.msra.mxu0 %v60
    %877 = vmatpush.msra.mxu0 %v59
    %878 = vmatpush.msra.mxu0 %v58
    %879 = vmatpush.msra.mxu0 %v57
    %880 = vmatpush.msra.mxu0 %v56
    %881 = vmatpush.msra.mxu0 %v55
    %882 = vmatpush.msra.mxu0 %v54
    %883 = vmatmul.f32.gmra.mxu0 %v755
    %v884 = vpop.f32.mrf.mxu0
    %v885 = vadd.f32 %v865, %v884
    %886 = vdwg.mxu0
    %887 = vmatpush.msra.mxu0 %v85
    %888 = vmatpush.msra.mxu0 %v84
    %889 = vmatpush.msra.mxu0 %v83
    %890 = vmatpush.msra.mxu0 %v82
    %891 = vmatpush.msra.mxu0 %v81
    %892 = vmatpush.msra.mxu0 %v80
    %893 = vmatpush.msra.mxu0 %v79
    %894 = vmatpush.msra.mxu0 %v78
    %895 = vmatpush.msra.mxu0 %v77
    %896 = vmatpush.msra.mxu0 %v76
    %897 = vmatpush.msra.mxu0 %v75
    %898 = vmatpush.msra.mxu0 %v74
    %899 = vmatpush.msra.mxu0 %v73
    %900 = vmatpush.msra.mxu0 %v72
    %901 = vmatpush.msra.mxu0 %v71
    %902 = vmatpush.msra.mxu0 %v70
    %903 = vmatmul.f32.gmra.mxu0 %v756
    %v904 = vpop.f32.mrf.mxu0
    %v905 = vadd.f32 %v885, %v904
    %906 = vdwg.mxu0
    %907 = vmatpush.msra.mxu0 %v101
    %908 = vmatpush.msra.mxu0 %v100
    %909 = vmatpush.msra.mxu0 %v99
    %910 = vmatpush.msra.mxu0 %v98
    %911 = vmatpush.msra.mxu0 %v97
    %912 = vmatpush.msra.mxu0 %v96
    %913 = vmatpush.msra.mxu0 %v95
    %914 = vmatpush.msra.mxu0 %v94
    %915 = vmatpush.msra.mxu0 %v93
    %916 = vmatpush.msra.mxu0 %v92
    %917 = vmatpush.msra.mxu0 %v91
    %918 = vmatpush.msra.mxu0 %v90
    %919 = vmatpush.msra.mxu0 %v89
    %920 = vmatpush.msra.mxu0 %v88
    %921 = vmatpush.msra.mxu0 %v87
    %922 = vmatpush.msra.mxu0 %v86
    %923 = vmatmul.f32.gmra.mxu0 %v757
    %v924 = vpop.f32.mrf.mxu0
    %v925 = vadd.f32 %v905, %v924
    %926 = vdwg.mxu0
    %927 = vmatpush.msra.mxu0 %v117
    %928 = vmatpush.msra.mxu0 %v116
    %929 = vmatpush.msra.mxu0 %v115
    %930 = vmatpush.msra.mxu0 %v114
    %931 = vmatpush.msra.mxu0 %v113
    %932 = vmatpush.msra.mxu0 %v112
    %933 = vmatpush.msra.mxu0 %v111
    %934 = vmatpush.msra.mxu0 %v110
    %935 = vmatpush.msra.mxu0 %v109
    %936 = vmatpush.msra.mxu0 %v108
    %937 = vmatpush.msra.mxu0 %v107
    %938 = vmatpush.msra.mxu0 %v106
    %939 = vmatpush.msra.mxu0 %v105
    %940 = vmatpush.msra.mxu0 %v104
    %941 = vmatpush.msra.mxu0 %v103
    %942 = vmatpush.msra.mxu0 %v102
    %943 = vmatmul.f32.gmra.mxu0 %v758
    %v944 = vpop.f32.mrf.mxu0
    %v945 = vadd.f32 %v925, %v944
    %946 = vdwg.mxu0
    %947 = vmatpush.msra.mxu0 %v133
    %948 = vmatpush.msra.mxu0 %v132
    %949 = vmatpush.msra.mxu0 %v131
    %950 = vmatpush.msra.mxu0 %v130
    %951 = vmatpush.msra.mxu0 %v129
    %952 = vmatpush.msra.mxu0 %v128
    %953 = vmatpush.msra.mxu0 %v127
    %954 = vmatpush.msra.mxu0 %v126
    %955 = vmatpush.msra.mxu0 %v125
    %956 = vmatpush.msra.mxu0 %v124
    %957 = vmatpush.msra.mxu0 %v123
    %958 = vmatpush.msra.mxu0 %v122
    %959 = vmatpush.msra.mxu0 %v121
    %960 = vmatpush.msra.mxu0 %v120
    %961 = vmatpush.msra.mxu0 %v119
    %962 = vmatpush.msra.mxu0 %v118
    %963 = vmatmul.f32.gmra.mxu0 %v759
    %v964 = vpop.f32.mrf.mxu0
    %v965 = vadd.f32 %v945, %v964
    %966 = vdwg.mxu0
    %967 = vmatpush.msra.mxu0 %v149
    %968 = vmatpush.msra.mxu0 %v148
    %969 = vmatpush.msra.mxu0 %v147
    %970 = vmatpush.msra.mxu0 %v146
    %971 = vmatpush.msra.mxu0 %v145
    %972 = vmatpush.msra.mxu0 %v144
    %973 = vmatpush.msra.mxu0 %v143
    %974 = vmatpush.msra.mxu0 %v142
    %975 = vmatpush.msra.mxu0 %v141
    %976 = vmatpush.msra.mxu0 %v140
    %977 = vmatpush.msra.mxu0 %v139
    %978 = vmatpush.msra.mxu0 %v138
    %979 = vmatpush.msra.mxu0 %v137
    %980 = vmatpush.msra.mxu0 %v136
    %981 = vmatpush.msra.mxu0 %v135
    %982 = vmatpush.msra.mxu0 %v134
    %983 = vmatmul.f32.gmra.mxu0 %v760
    %v984 = vpop.f32.mrf.mxu0
    %v985 = vadd.f32 %v965, %v984
    %986 = vdwg.mxu0
    %987 = vmatpush.msra.mxu0 %v165
    %988 = vmatpush.msra.mxu0 %v164
    %989 = vmatpush.msra.mxu0 %v163
    %990 = vmatpush.msra.mxu0 %v162
    %991 = vmatpush.msra.mxu0 %v161
    %992 = vmatpush.msra.mxu0 %v160
    %993 = vmatpush.msra.mxu0 %v159
    %994 = vmatpush.msra.mxu0 %v158
    %995 = vmatpush.msra.mxu0 %v157
    %996 = vmatpush.msra.mxu0 %v156
    %997 = vmatpush.msra.mxu0 %v155
    %998 = vmatpush.msra.mxu0 %v154
    %999 = vmatpush.msra.mxu0 %v153
    %1000 = vmatpush.msra.mxu0 %v152
    %1001 = vmatpush.msra.mxu0 %v151
    %1002 = vmatpush.msra.mxu0 %v150
    %1003 = vmatmul.f32.gmra.mxu0 %v761
    %v1004 = vpop.f32.mrf.mxu0
    %v1005 = vadd.f32 %v985, %v1004
    %1006 = vdwg.mxu0
    %1007 = vmatpush.msra.mxu0 %v181
    %1008 = vmatpush.msra.mxu0 %v180
    %1009 = vmatpush.msra.mxu0 %v179
    %1010 = vmatpush.msra.mxu0 %v178
    %1011 = vmatpush.msra.mxu0 %v177
    %1012 = vmatpush.msra.mxu0 %v176
    %1013 = vmatpush.msra.mxu0 %v175
    %1014 = vmatpush.msra.mxu0 %v174
    %1015 = vmatpush.msra.mxu0 %v173
    %1016 = vmatpush.msra.mxu0 %v172
    %1017 = vmatpush.msra.mxu0 %v171
    %1018 = vmatpush.msra.mxu0 %v170
    %1019 = vmatpush.msra.mxu0 %v169
    %1020 = vmatpush.msra.mxu0 %v168
    %1021 = vmatpush.msra.mxu0 %v167
    %1022 = vmatpush.msra.mxu0 %v166
    %1023 = vmatmul.f32.gmra.mxu0 %v764
    %v1024 = vpop.f32.mrf.mxu0
    %v1025 = vadd.f32 %v1005, %v1024
    %1026 = vdwg.mxu0
    %1027 = vmatpush.msra.mxu0 %v197
    %1028 = vmatpush.msra.mxu0 %v196
    %1029 = vmatpush.msra.mxu0 %v195
    %1030 = vmatpush.msra.mxu0 %v194
    %1031 = vmatpush.msra.mxu0 %v193
    %1032 = vmatpush.msra.mxu0 %v192
    %1033 = vmatpush.msra.mxu0 %v191
    %1034 = vmatpush.msra.mxu0 %v190
    %1035 = vmatpush.msra.mxu0 %v189
    %1036 = vmatpush.msra.mxu0 %v188
    %1037 = vmatpush.msra.mxu0 %v187
    %1038 = vmatpush.msra.mxu0 %v186
    %1039 = vmatpush.msra.mxu0 %v185
    %1040 = vmatpush.msra.mxu0 %v184
    %1041 = vmatpush.msra.mxu0 %v183
    %1042 = vmatpush.msra.mxu0 %v182
    %1043 = vmatmul.f32.gmra.mxu0 %v765
    %v1044 = vpop.f32.mrf.mxu0
    %v1045 = vadd.f32 %v1025, %v1044
    %1046 = vdwg.mxu0
    %1047 = vmatpush.msra.mxu0 %v213
    %1048 = vmatpush.msra.mxu0 %v212
    %1049 = vmatpush.msra.mxu0 %v211
    %1050 = vmatpush.msra.mxu0 %v210
    %1051 = vmatpush.msra.mxu0 %v209
    %1052 = vmatpush.msra.mxu0 %v208
    %1053 = vmatpush.msra.mxu0 %v207
    %1054 = vmatpush.msra.mxu0 %v206
    %1055 = vmatpush.msra.mxu0 %v205
    %1056 = vmatpush.msra.mxu0 %v204
    %1057 = vmatpush.msra.mxu0 %v203
    %1058 = vmatpush.msra.mxu0 %v202
    %1059 = vmatpush.msra.mxu0 %v201
    %1060 = vmatpush.msra.mxu0 %v200
    %1061 = vmatpush.msra.mxu0 %v199
    %1062 = vmatpush.msra.mxu0 %v198
    %1063 = vmatmul.f32.gmra.mxu0 %v766
    %v1064 = vpop.f32.mrf.mxu0
    %v1065 = vadd.f32 %v1045, %v1064
    %1066 = vdwg.mxu0
    %1067 = vmatpush.msra.mxu0 %v229
    %1068 = vmatpush.msra.mxu0 %v228
    %1069 = vmatpush.msra.mxu0 %v227
    %1070 = vmatpush.msra.mxu0 %v226
    %1071 = vmatpush.msra.mxu0 %v225
    %1072 = vmatpush.msra.mxu0 %v224
    %1073 = vmatpush.msra.mxu0 %v223
    %1074 = vmatpush.msra.mxu0 %v222
    %1075 = vmatpush.msra.mxu0 %v221
    %1076 = vmatpush.msra.mxu0 %v220
    %1077 = vmatpush.msra.mxu0 %v219
    %1078 = vmatpush.msra.mxu0 %v218
    %1079 = vmatpush.msra.mxu0 %v217
    %1080 = vmatpush.msra.mxu0 %v216
    %1081 = vmatpush.msra.mxu0 %v215
    %1082 = vmatpush.msra.mxu0 %v214
    %1083 = vmatmul.f32.gmra.mxu0 %v767
    %v1084 = vpop.f32.mrf.mxu0
    %v1085 = vadd.f32 %v1065, %v1084
    %1086 = vdwg.mxu0
    %1087 = vmatpush.msra.mxu0 %v245
    %1088 = vmatpush.msra.mxu0 %v244
    %1089 = vmatpush.msra.mxu0 %v243
    %1090 = vmatpush.msra.mxu0 %v242
    %1091 = vmatpush.msra.mxu0 %v241
    %1092 = vmatpush.msra.mxu0 %v240
    %1093 = vmatpush.msra.mxu0 %v239
    %1094 = vmatpush.msra.mxu0 %v238
    %1095 = vmatpush.msra.mxu0 %v237
    %1096 = vmatpush.msra.mxu0 %v236
    %1097 = vmatpush.msra.mxu0 %v235
    %1098 = vmatpush.msra.mxu0 %v234
    %1099 = vmatpush.msra.mxu0 %v233
    %1100 = vmatpush.msra.mxu0 %v232
    %1101 = vmatpush.msra.mxu0 %v231
    %1102 = vmatpush.msra.mxu0 %v230
    %1103 = vmatmul.f32.gmra.mxu0 %v768
    %v1104 = vpop.f32.mrf.mxu0
    %v1105 = vadd.f32 %v1085, %v1104
    %1106 = vdwg.mxu0
    %1107 = vmatpush.msra.mxu0 %v261
    %1108 = vmatpush.msra.mxu0 %v260
    %1109 = vmatpush.msra.mxu0 %v259
    %1110 = vmatpush.msra.mxu0 %v258
    %1111 = vmatpush.msra.mxu0 %v257
    %1112 = vmatpush.msra.mxu0 %v256
    %1113 = vmatpush.msra.mxu0 %v255
    %1114 = vmatpush.msra.mxu0 %v254
    %1115 = vmatpush.msra.mxu0 %v253
    %1116 = vmatpush.msra.mxu0 %v252
    %1117 = vmatpush.msra.mxu0 %v251
    %1118 = vmatpush.msra.mxu0 %v250
    %1119 = vmatpush.msra.mxu0 %v249
    %1120 = vmatpush.msra.mxu0 %v248
    %1121 = vmatpush.msra.mxu0 %v247
    %1122 = vmatpush.msra.mxu0 %v246
    %1123 = vmatmul.f32.gmra.mxu0 %v769
    %v1124 = vpop.f32.mrf.mxu0
    %v1125 = vadd.f32 %v1105, %v1124
    %1126 = vdwg.mxu0
    %1127 = vmatpush.msra.mxu0 %v277
    %1128 = vmatpush.msra.mxu0 %v276
    %1129 = vmatpush.msra.mxu0 %v275
    %1130 = vmatpush.msra.mxu0 %v274
    %1131 = vmatpush.msra.mxu0 %v273
    %1132 = vmatpush.msra.mxu0 %v272
    %1133 = vmatpush.msra.mxu0 %v271
    %1134 = vmatpush.msra.mxu0 %v270
    %1135 = vmatpush.msra.mxu0 %v269
    %1136 = vmatpush.msra.mxu0 %v268
    %1137 = vmatpush.msra.mxu0 %v267
    %1138 = vmatpush.msra.mxu0 %v266
    %1139 = vmatpush.msra.mxu0 %v265
    %1140 = vmatpush.msra.mxu0 %v264
    %1141 = vmatpush.msra.mxu0 %v263
    %1142 = vmatpush.msra.mxu0 %v262
    %1143 = vmatmul.f32.gmra.mxu0 %v770
    %v1144 = vpop.f32.mrf.mxu0
    %v1145 = vadd.f32 %v1125, %v1144
    %1146 = vdwg.mxu0
    %1147 = vmatpush.msra.mxu0 %v293
    %1148 = vmatpush.msra.mxu0 %v292
    %1149 = vmatpush.msra.mxu0 %v291
    %1150 = vmatpush.msra.mxu0 %v290
    %1151 = vmatpush.msra.mxu0 %v289
    %1152 = vmatpush.msra.mxu0 %v288
    %1153 = vmatpush.msra.mxu0 %v287
    %1154 = vmatpush.msra.mxu0 %v286
    %1155 = vmatpush.msra.mxu0 %v285
    %1156 = vmatpush.msra.mxu0 %v284
    %1157 = vmatpush.msra.mxu0 %v283
    %1158 = vmatpush.msra.mxu0 %v282
    %1159 = vmatpush.msra.mxu0 %v281
    %1160 = vmatpush.msra.mxu0 %v280
    %1161 = vmatpush.msra.mxu0 %v279
    %1162 = vmatpush.msra.mxu0 %v278
    %1163 = vmatmul.f32.gmra.mxu0 %v771
    %v1164 = vpop.f32.mrf.mxu0
    %v1165 = vadd.f32 %v1145, %v1164
    %1166 = vdwg.mxu0
    %1167 = vmatpush.msra.mxu0 %v309
    %1168 = vmatpush.msra.mxu0 %v308
    %1169 = vmatpush.msra.mxu0 %v307
    %1170 = vmatpush.msra.mxu0 %v306
    %1171 = vmatpush.msra.mxu0 %v305
    %1172 = vmatpush.msra.mxu0 %v304
    %1173 = vmatpush.msra.mxu0 %v303
    %1174 = vmatpush.msra.mxu0 %v302
    %1175 = vmatpush.msra.mxu0 %v301
    %1176 = vmatpush.msra.mxu0 %v300
    %1177 = vmatpush.msra.mxu0 %v299
    %1178 = vmatpush.msra.mxu0 %v298
    %1179 = vmatpush.msra.mxu0 %v297
    %1180 = vmatpush.msra.mxu0 %v296
    %1181 = vmatpush.msra.mxu0 %v295
    %1182 = vmatpush.msra.mxu0 %v294
    %1183 = vmatmul.f32.gmra.mxu0 %v774
    %v1184 = vpop.f32.mrf.mxu0
    %v1185 = vadd.f32 %v1165, %v1184
    %1186 = vdwg.mxu0
    %1187 = vmatpush.msra.mxu0 %v325
    %1188 = vmatpush.msra.mxu0 %v324
    %1189 = vmatpush.msra.mxu0 %v323
    %1190 = vmatpush.msra.mxu0 %v322
    %1191 = vmatpush.msra.mxu0 %v321
    %1192 = vmatpush.msra.mxu0 %v320
    %1193 = vmatpush.msra.mxu0 %v319
    %1194 = vmatpush.msra.mxu0 %v318
    %1195 = vmatpush.msra.mxu0 %v317
    %1196 = vmatpush.msra.mxu0 %v316
    %1197 = vmatpush.msra.mxu0 %v315
    %1198 = vmatpush.msra.mxu0 %v314
    %1199 = vmatpush.msra.mxu0 %v313
    %1200 = vmatpush.msra.mxu0 %v312
    %1201 = vmatpush.msra.mxu0 %v311
    %1202 = vmatpush.msra.mxu0 %v310
    %1203 = vmatmul.f32.gmra.mxu0 %v775
    %v1204 = vpop.f32.mrf.mxu0
    %v1205 = vadd.f32 %v1185, %v1204
    %1206 = vdwg.mxu0
    %1207 = vmatpush.msra.mxu0 %v341
    %1208 = vmatpush.msra.mxu0 %v340
    %1209 = vmatpush.msra.mxu0 %v339
    %1210 = vmatpush.msra.mxu0 %v338
    %1211 = vmatpush.msra.mxu0 %v337
    %1212 = vmatpush.msra.mxu0 %v336
    %1213 = vmatpush.msra.mxu0 %v335
    %1214 = vmatpush.msra.mxu0 %v334
    %1215 = vmatpush.msra.mxu0 %v333
    %1216 = vmatpush.msra.mxu0 %v332
    %1217 = vmatpush.msra.mxu0 %v331
    %1218 = vmatpush.msra.mxu0 %v330
    %1219 = vmatpush.msra.mxu0 %v329
    %1220 = vmatpush.msra.mxu0 %v328
    %1221 = vmatpush.msra.mxu0 %v327
    %1222 = vmatpush.msra.mxu0 %v326
    %1223 = vmatmul.f32.gmra.mxu0 %v776
    %v1224 = vpop.f32.mrf.mxu0
    %v1225 = vadd.f32 %v1205, %v1224
    %1226 = vdwg.mxu0
    %1227 = vmatpush.msra.mxu0 %v357
    %1228 = vmatpush.msra.mxu0 %v356
    %1229 = vmatpush.msra.mxu0 %v355
    %1230 = vmatpush.msra.mxu0 %v354
    %1231 = vmatpush.msra.mxu0 %v353
    %1232 = vmatpush.msra.mxu0 %v352
    %1233 = vmatpush.msra.mxu0 %v351
    %1234 = vmatpush.msra.mxu0 %v350
    %1235 = vmatpush.msra.mxu0 %v349
    %1236 = vmatpush.msra.mxu0 %v348
    %1237 = vmatpush.msra.mxu0 %v347
    %1238 = vmatpush.msra.mxu0 %v346
    %1239 = vmatpush.msra.mxu0 %v345
    %1240 = vmatpush.msra.mxu0 %v344
    %1241 = vmatpush.msra.mxu0 %v343
    %1242 = vmatpush.msra.mxu0 %v342
    %1243 = vmatmul.f32.gmra.mxu0 %v777
    %v1244 = vpop.f32.mrf.mxu0
    %v1245 = vadd.f32 %v1225, %v1244
    %1246 = vdwg.mxu0
    %1247 = vmatpush.msra.mxu0 %v373
    %1248 = vmatpush.msra.mxu0 %v372
    %1249 = vmatpush.msra.mxu0 %v371
    %1250 = vmatpush.msra.mxu0 %v370
    %1251 = vmatpush.msra.mxu0 %v369
    %1252 = vmatpush.msra.mxu0 %v368
    %1253 = vmatpush.msra.mxu0 %v367
    %1254 = vmatpush.msra.mxu0 %v366
    %1255 = vmatpush.msra.mxu0 %v365
    %1256 = vmatpush.msra.mxu0 %v364
    %1257 = vmatpush.msra.mxu0 %v363
    %1258 = vmatpush.msra.mxu0 %v362
    %1259 = vmatpush.msra.mxu0 %v361
    %1260 = vmatpush.msra.mxu0 %v360
    %1261 = vmatpush.msra.mxu0 %v359
    %1262 = vmatpush.msra.mxu0 %v358
    %1263 = vmatmul.f32.gmra.mxu0 %v778
    %v1264 = vpop.f32.mrf.mxu0
    %v1265 = vadd.f32 %v1245, %v1264
    %1266 = vdwg.mxu0
    %1267 = vmatpush.msra.mxu0 %v389
    %1268 = vmatpush.msra.mxu0 %v388
    %1269 = vmatpush.msra.mxu0 %v387
    %1270 = vmatpush.msra.mxu0 %v386
    %1271 = vmatpush.msra.mxu0 %v385
    %1272 = vmatpush.msra.mxu0 %v384
    %1273 = vmatpush.msra.mxu0 %v383
    %1274 = vmatpush.msra.mxu0 %v382
    %1275 = vmatpush.msra.mxu0 %v381
    %1276 = vmatpush.msra.mxu0 %v380
    %1277 = vmatpush.msra.mxu0 %v379
    %1278 = vmatpush.msra.mxu0 %v378
    %1279 = vmatpush.msra.mxu0 %v377
    %1280 = vmatpush.msra.mxu0 %v376
    %1281 = vmatpush.msra.mxu0 %v375
    %1282 = vmatpush.msra.mxu0 %v374
    %1283 = vmatmul.f32.gmra.mxu0 %v779
    %v1284 = vpop.f32.mrf.mxu0
    %v1285 = vadd.f32 %v1265, %v1284
    %1286 = vdwg.mxu0
    %1287 = vmatpush.msra.mxu0 %v405
    %1288 = vmatpush.msra.mxu0 %v404
    %1289 = vmatpush.msra.mxu0 %v403
    %1290 = vmatpush.msra.mxu0 %v402
    %1291 = vmatpush.msra.mxu0 %v401
    %1292 = vmatpush.msra.mxu0 %v400
    %1293 = vmatpush.msra.mxu0 %v399
    %1294 = vmatpush.msra.mxu0 %v398
    %1295 = vmatpush.msra.mxu0 %v397
    %1296 = vmatpush.msra.mxu0 %v396
    %1297 = vmatpush.msra.mxu0 %v395
    %1298 = vmatpush.msra.mxu0 %v394
    %1299 = vmatpush.msra.mxu0 %v393
    %1300 = vmatpush.msra.mxu0 %v392
    %1301 = vmatpush.msra.mxu0 %v391
    %1302 = vmatpush.msra.mxu0 %v390
    %1303 = vmatmul.f32.gmra.mxu0 %v780
    %v1304 = vpop.f32.mrf.mxu0
    %v1305 = vadd.f32 %v1285, %v1304
    %1306 = vdwg.mxu0
    %1307 = vmatpush.msra.mxu0 %v421
    %1308 = vmatpush.msra.mxu0 %v420
    %1309 = vmatpush.msra.mxu0 %v419
    %1310 = vmatpush.msra.mxu0 %v418
    %1311 = vmatpush.msra.mxu0 %v417
    %1312 = vmatpush.msra.mxu0 %v416
    %1313 = vmatpush.msra.mxu0 %v415
    %1314 = vmatpush.msra.mxu0 %v414
    %1315 = vmatpush.msra.mxu0 %v413
    %1316 = vmatpush.msra.mxu0 %v412
    %1317 = vmatpush.msra.mxu0 %v411
    %1318 = vmatpush.msra.mxu0 %v410
    %1319 = vmatpush.msra.mxu0 %v409
    %1320 = vmatpush.msra.mxu0 %v408
    %1321 = vmatpush.msra.mxu0 %v407
    %1322 = vmatpush.msra.mxu0 %v406
    %1323 = vmatmul.f32.gmra.mxu0 %v781
    %v1324 = vpop.f32.mrf.mxu0
    %v1325 = vadd.f32 %v1305, %v1324
    %1326 = vdwg.mxu0
    %1327 = vmatpush.msra.mxu0 %v437
    %1328 = vmatpush.msra.mxu0 %v436
    %1329 = vmatpush.msra.mxu0 %v435
    %1330 = vmatpush.msra.mxu0 %v434
    %1331 = vmatpush.msra.mxu0 %v433
    %1332 = vmatpush.msra.mxu0 %v432
    %1333 = vmatpush.msra.mxu0 %v431
    %1334 = vmatpush.msra.mxu0 %v430
    %1335 = vmatpush.msra.mxu0 %v429
    %1336 = vmatpush.msra.mxu0 %v428
    %1337 = vmatpush.msra.mxu0 %v427
    %1338 = vmatpush.msra.mxu0 %v426
    %1339 = vmatpush.msra.mxu0 %v425
    %1340 = vmatpush.msra.mxu0 %v424
    %1341 = vmatpush.msra.mxu0 %v423
    %1342 = vmatpush.msra.mxu0 %v422
    %1343 = vmatmul.f32.gmra.mxu0 %v784
    %v1344 = vpop.f32.mrf.mxu0
    %v1345 = vadd.f32 %v1325, %v1344
    %1346 = vdwg.mxu0
    %1347 = vmatpush.msra.mxu0 %v453
    %1348 = vmatpush.msra.mxu0 %v452
    %1349 = vmatpush.msra.mxu0 %v451
    %1350 = vmatpush.msra.mxu0 %v450
    %1351 = vmatpush.msra.mxu0 %v449
    %1352 = vmatpush.msra.mxu0 %v448
    %1353 = vmatpush.msra.mxu0 %v447
    %1354 = vmatpush.msra.mxu0 %v446
    %1355 = vmatpush.msra.mxu0 %v445
    %1356 = vmatpush.msra.mxu0 %v444
    %1357 = vmatpush.msra.mxu0 %v443
    %1358 = vmatpush.msra.mxu0 %v442
    %1359 = vmatpush.msra.mxu0 %v441
    %1360 = vmatpush.msra.mxu0 %v440
    %1361 = vmatpush.msra.mxu0 %v439
    %1362 = vmatpush.msra.mxu0 %v438
    %1363 = vmatmul.f32.gmra.mxu0 %v785
    %v1364 = vpop.f32.mrf.mxu0
    %v1365 = vadd.f32 %v1345, %v1364
    %1366 = vdwg.mxu0
    %1367 = vmatpush.msra.mxu0 %v469
    %1368 = vmatpush.msra.mxu0 %v468
    %1369 = vmatpush.msra.mxu0 %v467
    %1370 = vmatpush.msra.mxu0 %v466
    %1371 = vmatpush.msra.mxu0 %v465
    %1372 = vmatpush.msra.mxu0 %v464
    %1373 = vmatpush.msra.mxu0 %v463
    %1374 = vmatpush.msra.mxu0 %v462
    %1375 = vmatpush.msra.mxu0 %v461
    %1376 = vmatpush.msra.mxu0 %v460
    %1377 = vmatpush.msra.mxu0 %v459
    %1378 = vmatpush.msra.mxu0 %v458
    %1379 = vmatpush.msra.mxu0 %v457
    %1380 = vmatpush.msra.mxu0 %v456
    %1381 = vmatpush.msra.mxu0 %v455
    %1382 = vmatpush.msra.mxu0 %v454
    %1383 = vmatmul.f32.gmra.mxu0 %v786
    %v1384 = vpop.f32.mrf.mxu0
    %v1385 = vadd.f32 %v1365, %v1384
    %1386 = vdwg.mxu0
    %1387 = vmatpush.msra.mxu0 %v485
    %1388 = vmatpush.msra.mxu0 %v484
    %1389 = vmatpush.msra.mxu0 %v483
    %1390 = vmatpush.msra.mxu0 %v482
    %1391 = vmatpush.msra.mxu0 %v481
    %1392 = vmatpush.msra.mxu0 %v480
    %1393 = vmatpush.msra.mxu0 %v479
    %1394 = vmatpush.msra.mxu0 %v478
    %1395 = vmatpush.msra.mxu0 %v477
    %1396 = vmatpush.msra.mxu0 %v476
    %1397 = vmatpush.msra.mxu0 %v475
    %1398 = vmatpush.msra.mxu0 %v474
    %1399 = vmatpush.msra.mxu0 %v473
    %1400 = vmatpush.msra.mxu0 %v472
    %1401 = vmatpush.msra.mxu0 %v471
    %1402 = vmatpush.msra.mxu0 %v470
    %1403 = vmatmul.f32.gmra.mxu0 %v787
    %v1404 = vpop.f32.mrf.mxu0
    %v1405 = vadd.f32 %v1385, %v1404
    %1406 = vdwg.mxu0
    %1407 = vmatpush.msra.mxu0 %v501
    %1408 = vmatpush.msra.mxu0 %v500
    %1409 = vmatpush.msra.mxu0 %v499
    %1410 = vmatpush.msra.mxu0 %v498
    %1411 = vmatpush.msra.mxu0 %v497
    %1412 = vmatpush.msra.mxu0 %v496
    %1413 = vmatpush.msra.mxu0 %v495
    %1414 = vmatpush.msra.mxu0 %v494
    %1415 = vmatpush.msra.mxu0 %v493
    %1416 = vmatpush.msra.mxu0 %v492
    %1417 = vmatpush.msra.mxu0 %v491
    %1418 = vmatpush.msra.mxu0 %v490
    %1419 = vmatpush.msra.mxu0 %v489
    %1420 = vmatpush.msra.mxu0 %v488
    %1421 = vmatpush.msra.mxu0 %v487
    %1422 = vmatpush.msra.mxu0 %v486
    %1423 = vmatmul.f32.gmra.mxu0 %v788
    %v1424 = vpop.f32.mrf.mxu0
    %v1425 = vadd.f32 %v1405, %v1424
    %1426 = vdwg.mxu0
    %1427 = vmatpush.msra.mxu0 %v517
    %1428 = vmatpush.msra.mxu0 %v516
    %1429 = vmatpush.msra.mxu0 %v515
    %1430 = vmatpush.msra.mxu0 %v514
    %1431 = vmatpush.msra.mxu0 %v513
    %1432 = vmatpush.msra.mxu0 %v512
    %1433 = vmatpush.msra.mxu0 %v511
    %1434 = vmatpush.msra.mxu0 %v510
    %1435 = vmatpush.msra.mxu0 %v509
    %1436 = vmatpush.msra.mxu0 %v508
    %1437 = vmatpush.msra.mxu0 %v507
    %1438 = vmatpush.msra.mxu0 %v506
    %1439 = vmatpush.msra.mxu0 %v505
    %1440 = vmatpush.msra.mxu0 %v504
    %1441 = vmatpush.msra.mxu0 %v503
    %1442 = vmatpush.msra.mxu0 %v502
    %1443 = vmatmul.f32.gmra.mxu0 %v789
    %v1444 = vpop.f32.mrf.mxu0
    %v1445 = vadd.f32 %v1425, %v1444
    %1446 = vdwg.mxu0
    %1447 = vmatpush.msra.mxu0 %v533
    %1448 = vmatpush.msra.mxu0 %v532
    %1449 = vmatpush.msra.mxu0 %v531
    %1450 = vmatpush.msra.mxu0 %v530
    %1451 = vmatpush.msra.mxu0 %v529
    %1452 = vmatpush.msra.mxu0 %v528
    %1453 = vmatpush.msra.mxu0 %v527
    %1454 = vmatpush.msra.mxu0 %v526
    %1455 = vmatpush.msra.mxu0 %v525
    %1456 = vmatpush.msra.mxu0 %v524
    %1457 = vmatpush.msra.mxu0 %v523
    %1458 = vmatpush.msra.mxu0 %v522
    %1459 = vmatpush.msra.mxu0 %v521
    %1460 = vmatpush.msra.mxu0 %v520
    %1461 = vmatpush.msra.mxu0 %v519
    %1462 = vmatpush.msra.mxu0 %v518
    %1463 = vmatmul.f32.gmra.mxu0 %v790
    %v1464 = vpop.f32.mrf.mxu0
    %v1465 = vadd.f32 %v1445, %v1464
    %1466 = vdwg.mxu0
    %1467 = vmatpush.msra.mxu0 %v549
    %1468 = vmatpush.msra.mxu0 %v548
    %1469 = vmatpush.msra.mxu0 %v547
    %1470 = vmatpush.msra.mxu0 %v546
    %1471 = vmatpush.msra.mxu0 %v545
    %1472 = vmatpush.msra.mxu0 %v544
    %1473 = vmatpush.msra.mxu0 %v543
    %1474 = vmatpush.msra.mxu0 %v542
    %1475 = vmatpush.msra.mxu0 %v541
    %1476 = vmatpush.msra.mxu0 %v540
    %1477 = vmatpush.msra.mxu0 %v539
    %1478 = vmatpush.msra.mxu0 %v538
    %1479 = vmatpush.msra.mxu0 %v537
    %1480 = vmatpush.msra.mxu0 %v536
    %1481 = vmatpush.msra.mxu0 %v535
    %1482 = vmatpush.msra.mxu0 %v534
    %1483 = vmatmul.f32.gmra.mxu0 %v791
    %v1484 = vpop.f32.mrf.mxu0
    %v1485 = vadd.f32 %v1465, %v1484
    %1486 = vdwg.mxu0
    %1487 = vmatpush.msra.mxu0 %v565
    %1488 = vmatpush.msra.mxu0 %v564
    %1489 = vmatpush.msra.mxu0 %v563
    %1490 = vmatpush.msra.mxu0 %v562
    %1491 = vmatpush.msra.mxu0 %v561
    %1492 = vmatpush.msra.mxu0 %v560
    %1493 = vmatpush.msra.mxu0 %v559
    %1494 = vmatpush.msra.mxu0 %v558
    %1495 = vmatpush.msra.mxu0 %v557
    %1496 = vmatpush.msra.mxu0 %v556
    %1497 = vmatpush.msra.mxu0 %v555
    %1498 = vmatpush.msra.mxu0 %v554
    %1499 = vmatpush.msra.mxu0 %v553
    %1500 = vmatpush.msra.mxu0 %v552
    %1501 = vmatpush.msra.mxu0 %v551
    %1502 = vmatpush.msra.mxu0 %v550
    %1503 = vmatmul.f32.gmra.mxu0 %v794
    %v1504 = vpop.f32.mrf.mxu0
    %v1505 = vadd.f32 %v1485, %v1504
    %1506 = vdwg.mxu0
    %1507 = vmatpush.msra.mxu0 %v581
    %1508 = vmatpush.msra.mxu0 %v580
    %1509 = vmatpush.msra.mxu0 %v579
    %1510 = vmatpush.msra.mxu0 %v578
    %1511 = vmatpush.msra.mxu0 %v577
    %1512 = vmatpush.msra.mxu0 %v576
    %1513 = vmatpush.msra.mxu0 %v575
    %1514 = vmatpush.msra.mxu0 %v574
    %1515 = vmatpush.msra.mxu0 %v573
    %1516 = vmatpush.msra.mxu0 %v572
    %1517 = vmatpush.msra.mxu0 %v571
    %1518 = vmatpush.msra.mxu0 %v570
    %1519 = vmatpush.msra.mxu0 %v569
    %1520 = vmatpush.msra.mxu0 %v568
    %1521 = vmatpush.msra.mxu0 %v567
    %1522 = vmatpush.msra.mxu0 %v566
    %1523 = vmatmul.f32.gmra.mxu0 %v795
    %v1524 = vpop.f32.mrf.mxu0
    %v1525 = vadd.f32 %v1505, %v1524
    %1526 = vdwg.mxu0
    %1527 = vmatpush.msra.mxu0 %v597
    %1528 = vmatpush.msra.mxu0 %v596
    %1529 = vmatpush.msra.mxu0 %v595
    %1530 = vmatpush.msra.mxu0 %v594
    %1531 = vmatpush.msra.mxu0 %v593
    %1532 = vmatpush.msra.mxu0 %v592
    %1533 = vmatpush.msra.mxu0 %v591
    %1534 = vmatpush.msra.mxu0 %v590
    %1535 = vmatpush.msra.mxu0 %v589
    %1536 = vmatpush.msra.mxu0 %v588
    %1537 = vmatpush.msra.mxu0 %v587
    %1538 = vmatpush.msra.mxu0 %v586
    %1539 = vmatpush.msra.mxu0 %v585
    %1540 = vmatpush.msra.mxu0 %v584
    %1541 = vmatpush.msra.mxu0 %v583
    %1542 = vmatpush.msra.mxu0 %v582
    %1543 = vmatmul.f32.gmra.mxu0 %v796
    %v1544 = vpop.f32.mrf.mxu0
    %v1545 = vadd.f32 %v1525, %v1544
    %1546 = vdwg.mxu0
    %1547 = vmatpush.msra.mxu0 %v613
    %1548 = vmatpush.msra.mxu0 %v612
    %1549 = vmatpush.msra.mxu0 %v611
    %1550 = vmatpush.msra.mxu0 %v610
    %1551 = vmatpush.msra.mxu0 %v609
    %1552 = vmatpush.msra.mxu0 %v608
    %1553 = vmatpush.msra.mxu0 %v607
    %1554 = vmatpush.msra.mxu0 %v606
    %1555 = vmatpush.msra.mxu0 %v605
    %1556 = vmatpush.msra.mxu0 %v604
    %1557 = vmatpush.msra.mxu0 %v603
    %1558 = vmatpush.msra.mxu0 %v602
    %1559 = vmatpush.msra.mxu0 %v601
    %1560 = vmatpush.msra.mxu0 %v600
    %1561 = vmatpush.msra.mxu0 %v599
    %1562 = vmatpush.msra.mxu0 %v598
    %1563 = vmatmul.f32.gmra.mxu0 %v797
    %v1564 = vpop.f32.mrf.mxu0
    %v1565 = vadd.f32 %v1545, %v1564
    %1566 = vdwg.mxu0
    %1567 = vmatpush.msra.mxu0 %v629
    %1568 = vmatpush.msra.mxu0 %v628
    %1569 = vmatpush.msra.mxu0 %v627
    %1570 = vmatpush.msra.mxu0 %v626
    %1571 = vmatpush.msra.mxu0 %v625
    %1572 = vmatpush.msra.mxu0 %v624
    %1573 = vmatpush.msra.mxu0 %v623
    %1574 = vmatpush.msra.mxu0 %v622
    %1575 = vmatpush.msra.mxu0 %v621
    %1576 = vmatpush.msra.mxu0 %v620
    %1577 = vmatpush.msra.mxu0 %v619
    %1578 = vmatpush.msra.mxu0 %v618
    %1579 = vmatpush.msra.mxu0 %v617
    %1580 = vmatpush.msra.mxu0 %v616
    %1581 = vmatpush.msra.mxu0 %v615
    %1582 = vmatpush.msra.mxu0 %v614
    %1583 = vmatmul.f32.gmra.mxu0 %v798
    %v1584 = vpop.f32.mrf.mxu0
    %v1585 = vadd.f32 %v1565, %v1584
    %1586 = vdwg.mxu0
    %1587 = vmatpush.msra.mxu0 %v645
    %1588 = vmatpush.msra.mxu0 %v644
    %1589 = vmatpush.msra.mxu0 %v643
    %1590 = vmatpush.msra.mxu0 %v642
    %1591 = vmatpush.msra.mxu0 %v641
    %1592 = vmatpush.msra.mxu0 %v640
    %1593 = vmatpush.msra.mxu0 %v639
    %1594 = vmatpush.msra.mxu0 %v638
    %1595 = vmatpush.msra.mxu0 %v637
    %1596 = vmatpush.msra.mxu0 %v636
    %1597 = vmatpush.msra.mxu0 %v635
    %1598 = vmatpush.msra.mxu0 %v634
    %1599 = vmatpush.msra.mxu0 %v633
    %1600 = vmatpush.msra.mxu0 %v632
    %1601 = vmatpush.msra.mxu0 %v631
    %1602 = vmatpush.msra.mxu0 %v630
    %1603 = vmatmul.f32.gmra.mxu0 %v799
    %v1604 = vpop.f32.mrf.mxu0
    %v1605 = vadd.f32 %v1585, %v1604
    %1606 = vdwg.mxu0
    %1607 = vmatpush.msra.mxu0 %v661
    %1608 = vmatpush.msra.mxu0 %v660
    %1609 = vmatpush.msra.mxu0 %v659
    %1610 = vmatpush.msra.mxu0 %v658
    %1611 = vmatpush.msra.mxu0 %v657
    %1612 = vmatpush.msra.mxu0 %v656
    %1613 = vmatpush.msra.mxu0 %v655
    %1614 = vmatpush.msra.mxu0 %v654
    %1615 = vmatpush.msra.mxu0 %v653
    %1616 = vmatpush.msra.mxu0 %v652
    %1617 = vmatpush.msra.mxu0 %v651
    %1618 = vmatpush.msra.mxu0 %v650
    %1619 = vmatpush.msra.mxu0 %v649
    %1620 = vmatpush.msra.mxu0 %v648
    %1621 = vmatpush.msra.mxu0 %v647
    %1622 = vmatpush.msra.mxu0 %v646
    %1623 = vmatmul.f32.gmra.mxu0 %v800
    %v1624 = vpop.f32.mrf.mxu0
    %v1625 = vadd.f32 %v1605, %v1624
    %1626 = vdwg.mxu0
    %1627 = vmatpush.msra.mxu0 %v677
    %1628 = vmatpush.msra.mxu0 %v676
    %1629 = vmatpush.msra.mxu0 %v675
    %1630 = vmatpush.msra.mxu0 %v674
    %1631 = vmatpush.msra.mxu0 %v673
    %1632 = vmatpush.msra.mxu0 %v672
    %1633 = vmatpush.msra.mxu0 %v671
    %1634 = vmatpush.msra.mxu0 %v670
    %1635 = vmatpush.msra.mxu0 %v669
    %1636 = vmatpush.msra.mxu0 %v668
    %1637 = vmatpush.msra.mxu0 %v667
    %1638 = vmatpush.msra.mxu0 %v666
    %1639 = vmatpush.msra.mxu0 %v665
    %1640 = vmatpush.msra.mxu0 %v664
    %1641 = vmatpush.msra.mxu0 %v663
    %1642 = vmatpush.msra.mxu0 %v662
    %1643 = vmatmul.f32.gmra.mxu0 %v801
    %v1644 = vpop.f32.mrf.mxu0
    %v1645 = vadd.f32 %v1625, %v1644
    %1646 = vdwg.mxu0
    %1647 = vmatpush.msra.mxu0 %v693
    %1648 = vmatpush.msra.mxu0 %v692
    %1649 = vmatpush.msra.mxu0 %v691
    %1650 = vmatpush.msra.mxu0 %v690
    %1651 = vmatpush.msra.mxu0 %v689
    %1652 = vmatpush.msra.mxu0 %v688
    %1653 = vmatpush.msra.mxu0 %v687
    %1654 = vmatpush.msra.mxu0 %v686
    %1655 = vmatpush.msra.mxu0 %v685
    %1656 = vmatpush.msra.mxu0 %v684
    %1657 = vmatpush.msra.mxu0 %v683
    %1658 = vmatpush.msra.mxu0 %v682
    %1659 = vmatpush.msra.mxu0 %v681
    %1660 = vmatpush.msra.mxu0 %v680
    %1661 = vmatpush.msra.mxu0 %v679
    %1662 = vmatpush.msra.mxu0 %v678
    %1663 = vmatmul.f32.gmra.mxu0 %v803
    %v1664 = vpop.f32.mrf.mxu0
    %v1665 = vadd.f32 %v1645, %v1664
    %1666 = vdwg.mxu0
    %1667 = vmatpush.msra.mxu0 %v709
    %1668 = vmatpush.msra.mxu0 %v708
    %1669 = vmatpush.msra.mxu0 %v707
    %1670 = vmatpush.msra.mxu0 %v706
    %1671 = vmatpush.msra.mxu0 %v705
    %1672 = vmatpush.msra.mxu0 %v704
    %1673 = vmatpush.msra.mxu0 %v703
    %1674 = vmatpush.msra.mxu0 %v702
    %1675 = vmatpush.msra.mxu0 %v701
    %1676 = vmatpush.msra.mxu0 %v700
    %1677 = vmatpush.msra.mxu0 %v699
    %1678 = vmatpush.msra.mxu0 %v698
    %1679 = vmatpush.msra.mxu0 %v697
    %1680 = vmatpush.msra.mxu0 %v696
    %1681 = vmatpush.msra.mxu0 %v695
    %1682 = vmatpush.msra.mxu0 %v694
    %1683 = vmatmul.f32.gmra.mxu0 %v804
    %v1684 = vpop.f32.mrf.mxu0
    %v1685 = vadd.f32 %v1665, %v1684
    %1686 = vdwg.mxu0
    %v1687 = vld [vmem:[%s4] sm:$0x1]
    %v1689 = vperm.slane %v1687, 0
    %v1691 = vadd.f32 %v1685, %v1689
    %v1692 = vmax.f32 %v1691, 0.0
    %v1693 = vld [vmem:[%s5] sm:$0xff]
    %v1694 = vld [vmem:[%s5 + $0x8] sm:$0xff]
    %v1695 = vld [vmem:[%s5 + $0x10] sm:$0xff]
    %v1696 = vld [vmem:[%s5 + $0x18] sm:$0xff]
    %v1697 = vld [vmem:[%s5 + $0x20] sm:$0xff]
    %v1698 = vld [vmem:[%s5 + $0x28] sm:$0xff]
    %v1699 = vld [vmem:[%s5 + $0x30] sm:$0xff]
    %v1700 = vld [vmem:[%s5 + $0x38] sm:$0xff]
    %v1701 = vld [vmem:[%s5 + $0x40] sm:$0xff]
    %v1702 = vld [vmem:[%s5 + $0x48] sm:$0xff]
    %v1703 = vld [vmem:[%s5 + $0x50] sm:$0xff]
    %v1704 = vld [vmem:[%s5 + $0x58] sm:$0xff]
    %v1705 = vld [vmem:[%s5 + $0x60] sm:$0xff]
    %v1706 = vld [vmem:[%s5 + $0x68] sm:$0xff]
    %v1707 = vld [vmem:[%s5 + $0x70] sm:$0xff]
    %v1708 = vld [vmem:[%s5 + $0x78] sm:$0xff]
    %v1709 = vld [vmem:[%s5 + $0x80] sm:$0xff]
    %v1710 = vld [vmem:[%s5 + $0x88] sm:$0xff]
    %v1711 = vld [vmem:[%s5 + $0x90] sm:$0xff]
    %v1712 = vld [vmem:[%s5 + $0x98] sm:$0xff]
    %v1713 = vld [vmem:[%s5 + $0xa0] sm:$0xff]
    %v1714 = vld [vmem:[%s5 + $0xa8] sm:$0xff]
    %v1715 = vld [vmem:[%s5 + $0xb0] sm:$0xff]
    %v1716 = vld [vmem:[%s5 + $0xb8] sm:$0xff]
    %v1717 = vld [vmem:[%s5 + $0xc0] sm:$0xff]
    %v1718 = vld [vmem:[%s5 + $0xc8] sm:$0xff]
    %v1719 = vld [vmem:[%s5 + $0xd0] sm:$0xff]
    %v1720 = vld [vmem:[%s5 + $0xd8] sm:$0xff]
    %v1721 = vld [vmem:[%s5 + $0xe0] sm:$0xff]
    %v1722 = vld [vmem:[%s5 + $0xe8] sm:$0xff]
    %v1723 = vld [vmem:[%s5 + $0xf0] sm:$0xff]
    %v1724 = vld [vmem:[%s5 + $0xf8] sm:$0xff]
    %v1725 = vld [vmem:[%s6] sm:$0xf]
    %v1727 = vperm.slane %v1725, 0
    %v1728 = vperm.slane %v1725, 1
    %v1729 = vperm.slane %v1725, 2
    %v1730 = vperm.slane %v1725, 3
    %vm1735 = vcmask 523264
    %v1737 = vsel %vm1735, %v1692, 0
    %1739 = vmatpush.msra.mxu0 0.0
    %1740 = vmatpush.msra.mxu0 0.0
    %1741 = vmatpush.msra.mxu0 0.0
    %1742 = vmatpush.msra.mxu0 0.0
    %1743 = vmatpush.msra.mxu0 0.0
    %1744 = vmatpush.msra.mxu0 0.0
    %1745 = vmatpush.msra.mxu0 0.0
    %1746 = vmatpush.msra.mxu0 0.0
    %1747 = vmatpush.msra.mxu0 %v1721
    %1748 = vmatpush.msra.mxu0 %v1717
    %1749 = vmatpush.msra.mxu0 %v1713
    %1750 = vmatpush.msra.mxu0 %v1709
    %1751 = vmatpush.msra.mxu0 %v1705
    %1752 = vmatpush.msra.mxu0 %v1701
    %1753 = vmatpush.msra.mxu0 %v1697
    %1754 = vmatpush.msra.mxu0 %v1693
    %1755 = vmatmul.f32.gmra.mxu0 %v1737
    %v1756 = vpop.f32.mrf.mxu0
    %v1757 = vadd.f32 %v1727, %v1756
    %1758 = vdwg.mxu0
    %1759 = vmatpush.msra.mxu0 0.0
    %1760 = vmatpush.msra.mxu0 0.0
    %1761 = vmatpush.msra.mxu0 0.0
    %1762 = vmatpush.msra.mxu0 0.0
    %1763 = vmatpush.msra.mxu0 0.0
    %1764 = vmatpush.msra.mxu0 0.0
    %1765 = vmatpush.msra.mxu0 0.0
    %1766 = vmatpush.msra.mxu0 0.0
    %1767 = vmatpush.msra.mxu0 %v1722
    %1768 = vmatpush.msra.mxu0 %v1718
    %1769 = vmatpush.msra.mxu0 %v1714
    %1770 = vmatpush.msra.mxu0 %v1710
    %1771 = vmatpush.msra.mxu0 %v1706
    %1772 = vmatpush.msra.mxu0 %v1702
    %1773 = vmatpush.msra.mxu0 %v1698
    %1774 = vmatpush.msra.mxu0 %v1694
    %1775 = vmatmul.f32.gmra.mxu0 %v1737
    %v1776 = vpop.f32.mrf.mxu0
    %v1777 = vadd.f32 %v1728, %v1776
    %1778 = vdwg.mxu0
    %1779 = vmatpush.msra.mxu0 0.0
    %1780 = vmatpush.msra.mxu0 0.0
    %1781 = vmatpush.msra.mxu0 0.0
    %1782 = vmatpush.msra.mxu0 0.0
    %1783 = vmatpush.msra.mxu0 0.0
    %1784 = vmatpush.msra.mxu0 0.0
    %1785 = vmatpush.msra.mxu0 0.0
    %1786 = vmatpush.msra.mxu0 0.0
    %1787 = vmatpush.msra.mxu0 %v1723
    %1788 = vmatpush.msra.mxu0 %v1719
    %1789 = vmatpush.msra.mxu0 %v1715
    %1790 = vmatpush.msra.mxu0 %v1711
    %1791 = vmatpush.msra.mxu0 %v1707
    %1792 = vmatpush.msra.mxu0 %v1703
    %1793 = vmatpush.msra.mxu0 %v1699
    %1794 = vmatpush.msra.mxu0 %v1695
    %1795 = vmatmul.f32.gmra.mxu0 %v1737
    %v1796 = vpop.f32.mrf.mxu0
    %v1797 = vadd.f32 %v1729, %v1796
    %1798 = vdwg.mxu0
    %1799 = vmatpush.msra.mxu0 0.0
    %1800 = vmatpush.msra.mxu0 0.0
    %1801 = vmatpush.msra.mxu0 0.0
    %1802 = vmatpush.msra.mxu0 0.0
    %1803 = vmatpush.msra.mxu0 0.0
    %1804 = vmatpush.msra.mxu0 0.0
    %1805 = vmatpush.msra.mxu0 0.0
    %1806 = vmatpush.msra.mxu0 0.0
    %1807 = vmatpush.msra.mxu0 %v1724
    %1808 = vmatpush.msra.mxu0 %v1720
    %1809 = vmatpush.msra.mxu0 %v1716
    %1810 = vmatpush.msra.mxu0 %v1712
    %1811 = vmatpush.msra.mxu0 %v1708
    %1812 = vmatpush.msra.mxu0 %v1704
    %1813 = vmatpush.msra.mxu0 %v1700
    %1814 = vmatpush.msra.mxu0 %v1696
    %1815 = vmatmul.f32.gmra.mxu0 %v1737
    %v1816 = vpop.f32.mrf.mxu0
    %v1817 = vadd.f32 %v1730, %v1816
    %1818 = vdwg.mxu0
    %v1819 = vmul.f32 %v1817, %v1817
    %1821 = vrot.lane.b32.xlu0 %v1819, 127
    %v1822 = vpop.permute.xlu0 %1821
    %v1824 = vadd.f32 %v1819, %v1822
    %1825 = vrot.lane.b32.xlu0 %v1819, 126
    %v1826 = vpop.permute.xlu0 %1825
    %v1828 = vadd.f32 %v1824, %v1826
    %v1829 = vadd.f32 %v1828, 1e-08
    %v1830 = vrsqrt.pop %v1829
    %v1831 = vmul.f32 %v1830, %v1829
    %v1832 = vmul.f32 %v1831, %v1830
    %v1833 = vmul.f32 0.5, %v1832
    %v1834 = vsub.f32 1.5, %v1833
    %v1835 = vmul.f32 %v1830, %v1834
    %vm1836 = vweird.f32 %v1829
    %vm1837 = vweird.f32 %v1830
    %vm1838 = vmor %vm1836, %vm1837
    %v1839 = vsel %vm1838, %v1830, %v1835
    %v1840 = vmul.f32 %v1829, %v1839
    %v1841 = vand.u32 2147483647, %v1840
    %vm1842 = vcmp.le.f32.partialorder %v1841, 0.7853982
    %vm1843 = vcmp.lt.s32.totalorder %v1840, 0
    %v1844 = vand.u32 %v1840, 2139095040
    %v1845 = vshrl.u32 %v1844, 23
    %v1846 = vsub.s32 %v1845, 127
    %v1847 = vand.u32 2147483647, %v1840
    %v1848 = vand.u32 %v1847, 8388607
    %v1849 = vor.u32 %v1848, 8388608
    %v1850 = vsub.s32 0, %v1849
    %v1851 = vadd.s32 %v1846, 1
    %vm1852 = vcmp.gt.s32.totalorder %v1851, 0
    %v1853 = vsel %vm1852, %v1851, 0
    %v1854 = vshrl.u32 %v1853, 5
    %v1855 = vand.u32 %v1853, 31
    %v1856 = vsub.s32 32, %v1855
    %v1857 = vshrl.u32 683565275, %v1856
    %v1858 = vshll.u32 683565275, %v1855
    %v1859 = vshrl.u32 2475754826, %v1856
    %v1860 = vor.u32 %v1858, %v1859
    %v1861 = vshll.u32 2475754826, %v1855
    %v1862 = vshrl.u32 2131351028, %v1856
    %v1863 = vor.u32 %v1861, %v1862
    %v1864 = vshll.u32 2131351028, %v1855
    %v1865 = vshrl.u32 2102212464, %v1856
    %v1866 = vor.u32 %v1864, %v1865
    %v1867 = vshll.u32 2102212464, %v1855
    %v1868 = vshrl.u32 920167782, %v1856
    %v1869 = vor.u32 %v1867, %v1868
    %v1870 = vshll.u32 920167782, %v1855
    %v1871 = vshrl.u32 1326507024, %v1856
    %v1872 = vor.u32 %v1870, %v1871
    %vm1873 = vcmp.lt.s32.totalorder %v1854, 1
    %vm1874 = vcmp.lt.s32.totalorder %v1854, 2
    %vm1875 = vcmp.lt.s32.totalorder %v1854, 3
    %vm1876 = vcmp.lt.s32.totalorder %v1854, 4
    %v1877 = vsel %vm1873, %v1857, %v1860
    %v1878 = vsel %vm1876, %v1866, 2102212464
    %v1879 = vsel %vm1875, %v1863, %v1878
    %v1880 = vsel %vm1874, %v1877, %v1879
    %v1881 = vsel %vm1873, %v1860, %v1863
    %v1882 = vsel %vm1876, %v1869, 920167782
    %v1883 = vsel %vm1875, %v1866, %v1882
    %v1884 = vsel %vm1874, %v1881, %v1883
    %v1885 = vsel %vm1873, %v1863, %v1866
    %v1886 = vsel %vm1876, %v1872, 1326507024
    %v1887 = vsel %vm1875, %v1869, %v1886
    %v1888 = vsel %vm1874, %v1885, %v1887
    %v1889 = vshll.u32 %v1849, 8
    %v1890 = vand.u32 %v1889, 65535
    %v1891 = vshrl.u32 %v1889, 16
    %v1892 = vand.u32 %v1888, 65535
    %v1893 = vshrl.u32 %v1888, 16
    %v1894 = vmul.u32 %v1890, %v1892
    %v1895 = vmul.u32 %v1890, %v1893
    %v1896 = vmul.u32 %v1891, %v1892
    %v1897 = vmul.u32 %v1891, %v1893
    %v1898 = vshll.u32 %v1895, 16
    %v1899 = vshrl.u32 %v1895, 16
    %v1900 = vshll.u32 %v1896, 16
    %v1901 = vshrl.u32 %v1896, 16
    %vm1902 = vc.u32 %v1894, %v1898
    %v1903 = vsel %vm1902, 1, 0
    %v1904 = vadd.s32 %v1894, %v1898
    %v1905 = vadd.s32 %v1897, %v1903
    %vm1906 = vc.u32 %v1904, %v1900
    %v1907 = vsel %vm1906, 1, 0
    %v1908 = vadd.s32 %v1904, %v1900
    %v1909 = vadd.s32 %v1905, %v1907
    %v1910 = vadd.s32 %v1909, %v1899
    %v1911 = vadd.s32 %v1910, %v1901
    %v1912 = vand.u32 %v1889, 65535
    %v1913 = vshrl.u32 %v1889, 16
    %v1914 = vand.u32 %v1884, 65535
    %v1915 = vshrl.u32 %v1884, 16
    %v1916 = vmul.u32 %v1912, %v1914
    %v1917 = vmul.u32 %v1912, %v1915
    %v1918 = vmul.u32 %v1913, %v1914
    %v1919 = vmul.u32 %v1913, %v1915
    %v1920 = vshll.u32 %v1917, 16
    %v1921 = vshrl.u32 %v1917, 16
    %v1922 = vshll.u32 %v1918, 16
    %v1923 = vshrl.u32 %v1918, 16
    %vm1924 = vc.u32 %v1916, %v1920
    %v1925 = vsel %vm1924, 1, 0
    %v1926 = vadd.s32 %v1916, %v1920
    %v1927 = vadd.s32 %v1919, %v1925
    %vm1928 = vc.u32 %v1926, %v1922
    %v1929 = vsel %vm1928, 1, 0
    %v1930 = vadd.s32 %v1926, %v1922
    %v1931 = vadd.s32 %v1927, %v1929
    %v1932 = vadd.s32 %v1931, %v1921
    %v1933 = vadd.s32 %v1932, %v1923
    %v1934 = vmul.u32 %v1889, %v1880
    %v1935 = vadd.s32 %v1911, %v1930
    %vm1936 = vc.u32 %v1911, %v1930
    %v1937 = vadd.s32 %v1933, 1
    %v1938 = vsel %vm1936, %v1937, %v1933
    %v1939 = vadd.s32 %v1934, %v1938
    %v1940 = vadd.s32 %v1939, 536870912
    %v1941 = vshrl.u32 %v1940, 30
    %v1942 = vshll.u32 %v1941, 30
    %v1943 = vsub.s32 %v1939, %v1942
    %vm1944 = vcmp.lt.s32.totalorder %v1943, 0
    %v1945 = vsub.s32 0, %v1943
    %v1946 = vsel %vm1944, %v1945, %v1943
    %v1947 = vclz %v1946
    %v1948 = vsub.s32 %v1947, 2
    %vm1949 = vcmp.gt.s32.totalorder 0, %v1948
    %v1950 = vsel %vm1949, 0, %v1948
    %v1951 = vsub.s32 32, %v1950
    %v1952 = vshll.u32 %v1943, %v1950
    %v1953 = vshrl.u32 %v1935, %v1951
    %v1954 = vor.u32 %v1952, %v1953
    %v1955 = vsub.s32 4294967266, %v1950
    %v1956 = vadd.s32 %v1955, 127
    %v1957 = vshll.u32 %v1956, 23
    %v1958 = vor.u32 4788187, %v1957
    %v1959 = vand.u32 2147483647, %v1958
    %v1961 = vcvt.s32.f32 %v1954
    %v1962 = vmul.f32 %v1961, %v1959
    %v1963 = vxor.u32 %v1962, 2147483648
    %v1964 = vsel %vm1843, %v1963, %v1962
    %v1965 = vsub.s32 4, %v1941
    %v1966 = vsel %vm1843, %v1965, %v1941
    %v1967 = vsel %vm1842, %v1840, %v1964
    %v1968 = vsel %vm1842, 0, %v1966
    %v1969 = vmul.f32 %v1967, %v1967
    %v1970 = vmul.f32 %v1969, -0.001358992
    %v1971 = vadd.f32 %v1970, 0.041655596
    %v1972 = vmul.f32 %v1969, %v1971
    %v1973 = vadd.f32 %v1972, -0.4999988
    %v1974 = vmul.f32 %v1969, %v1973
    %v1975 = vadd.f32 1.0, %v1974
    %v1976 = vmul.f32 %v1967, %v1967
    %v1977 = vmul.f32 %v1976, -0.00019511016
    %v1978 = vadd.f32 %v1977, 0.008332121
    %v1979 = vmul.f32 %v1976, %v1978
    %v1980 = vadd.f32 %v1979, -0.16666654
    %v1981 = vmul.f32 %v1976, %v1980
    %v1982 = vadd.f32 %v1981, 1.0
    %v1983 = vmul.f32 %v1982, %v1967
    %vm1984 = vweird.f32 %v1840
    %v1985 = vadd.s32 %v1968, 3
    %v1986 = vand.u32 %v1985, 3
    %vm1987 = vcmp.lt.s32.totalorder %v1986, 2
    %vm1988 = vcmp.eq.s32.totalorder %v1986, 0
    %v1989 = vxor.u32 %v1983, 2147483648
    %v1990 = vsel %vm1988, %v1975, %v1989
    %vm1991 = vcmp.eq.s32.totalorder %v1986, 2
    %v1992 = vxor.u32 %v1975, 2147483648
    %v1993 = vsel %vm1991, %v1992, %v1983
    %v1994 = vsel %vm1987, %v1990, %v1993
    %v1995 = vsel %vm1984, nan, %v1994
    %v1996 = vand.u32 2147483647, %v1840
    %vm1997 = vcmp.le.f32.partialorder %v1996, 0.7853982
    %vm1998 = vcmp.lt.s32.totalorder %v1840, 0
    %v1999 = vand.u32 %v1840, 2139095040
    %v2000 = vshrl.u32 %v1999, 23
    %v2001 = vsub.s32 %v2000, 127
    %v2002 = vand.u32 2147483647, %v1840
    %v2003 = vand.u32 %v2002, 8388607
    %v2004 = vor.u32 %v2003, 8388608
    %v2005 = vsub.s32 0, %v2004
    %v2006 = vadd.s32 %v2001, 1
    %vm2007 = vcmp.gt.s32.totalorder %v2006, 0
    %v2008 = vsel %vm2007, %v2006, 0
    %v2009 = vshrl.u32 %v2008, 5
    %v2010 = vand.u32 %v2008, 31
    %v2011 = vsub.s32 32, %v2010
    %v2012 = vshrl.u32 683565275, %v2011
    %v2013 = vshll.u32 683565275, %v2010
    %v2014 = vshrl.u32 2475754826, %v2011
    %v2015 = vor.u32 %v2013, %v2014
    %v2016 = vshll.u32 2475754826, %v2010
    %v2017 = vshrl.u32 2131351028, %v2011
    %v2018 = vor.u32 %v2016, %v2017
    %v2019 = vshll.u32 2131351028, %v2010
    %v2020 = vshrl.u32 2102212464, %v2011
    %v2021 = vor.u32 %v2019, %v2020
    %v2022 = vshll.u32 2102212464, %v2010
    %v2023 = vshrl.u32 920167782, %v2011
    %v2024 = vor.u32 %v2022, %v2023
    %v2025 = vshll.u32 920167782, %v2010
    %v2026 = vshrl.u32 1326507024, %v2011
    %v2027 = vor.u32 %v2025, %v2026
    %vm2028 = vcmp.lt.s32.totalorder %v2009, 1
    %vm2029 = vcmp.lt.s32.totalorder %v2009, 2
    %vm2030 = vcmp.lt.s32.totalorder %v2009, 3
    %vm2031 = vcmp.lt.s32.totalorder %v2009, 4
    %v2032 = vsel %vm2028, %v2012, %v2015
    %v2033 = vsel %vm2031, %v2021, 2102212464
    %v2034 = vsel %vm2030, %v2018, %v2033
    %v2035 = vsel %vm2029, %v2032, %v2034
    %v2036 = vsel %vm2028, %v2015, %v2018
    %v2037 = vsel %vm2031, %v2024, 920167782
    %v2038 = vsel %vm2030, %v2021, %v2037
    %v2039 = vsel %vm2029, %v2036, %v2038
    %v2040 = vsel %vm2028, %v2018, %v2021
    %v2041 = vsel %vm2031, %v2027, 1326507024
    %v2042 = vsel %vm2030, %v2024, %v2041
    %v2043 = vsel %vm2029, %v2040, %v2042
    %v2044 = vshll.u32 %v2004, 8
    %v2045 = vand.u32 %v2044, 65535
    %v2046 = vshrl.u32 %v2044, 16
    %v2047 = vand.u32 %v2043, 65535
    %v2048 = vshrl.u32 %v2043, 16
    %v2049 = vmul.u32 %v2045, %v2047
    %v2050 = vmul.u32 %v2045, %v2048
    %v2051 = vmul.u32 %v2046, %v2047
    %v2052 = vmul.u32 %v2046, %v2048
    %v2053 = vshll.u32 %v2050, 16
    %v2054 = vshrl.u32 %v2050, 16
    %v2055 = vshll.u32 %v2051, 16
    %v2056 = vshrl.u32 %v2051, 16
    %vm2057 = vc.u32 %v2049, %v2053
    %v2058 = vsel %vm2057, 1, 0
    %v2059 = vadd.s32 %v2049, %v2053
    %v2060 = vadd.s32 %v2052, %v2058
    %vm2061 = vc.u32 %v2059, %v2055
    %v2062 = vsel %vm2061, 1, 0
    %v2063 = vadd.s32 %v2059, %v2055
    %v2064 = vadd.s32 %v2060, %v2062
    %v2065 = vadd.s32 %v2064, %v2054
    %v2066 = vadd.s32 %v2065, %v2056
    %v2067 = vand.u32 %v2044, 65535
    %v2068 = vshrl.u32 %v2044, 16
    %v2069 = vand.u32 %v2039, 65535
    %v2070 = vshrl.u32 %v2039, 16
    %v2071 = vmul.u32 %v2067, %v2069
    %v2072 = vmul.u32 %v2067, %v2070
    %v2073 = vmul.u32 %v2068, %v2069
    %v2074 = vmul.u32 %v2068, %v2070
    %v2075 = vshll.u32 %v2072, 16
    %v2076 = vshrl.u32 %v2072, 16
    %v2077 = vshll.u32 %v2073, 16
    %v2078 = vshrl.u32 %v2073, 16
    %vm2079 = vc.u32 %v2071, %v2075
    %v2080 = vsel %vm2079, 1, 0
    %v2081 = vadd.s32 %v2071, %v2075
    %v2082 = vadd.s32 %v2074, %v2080
    %vm2083 = vc.u32 %v2081, %v2077
    %v2084 = vsel %vm2083, 1, 0
    %v2085 = vadd.s32 %v2081, %v2077
    %v2086 = vadd.s32 %v2082, %v2084
    %v2087 = vadd.s32 %v2086, %v2076
    %v2088 = vadd.s32 %v2087, %v2078
    %v2089 = vmul.u32 %v2044, %v2035
    %v2090 = vadd.s32 %v2066, %v2085
    %vm2091 = vc.u32 %v2066, %v2085
    %v2092 = vadd.s32 %v2088, 1
    %v2093 = vsel %vm2091, %v2092, %v2088
    %v2094 = vadd.s32 %v2089, %v2093
    %v2095 = vadd.s32 %v2094, 536870912
    %v2096 = vshrl.u32 %v2095, 30
    %v2097 = vshll.u32 %v2096, 30
    %v2098 = vsub.s32 %v2094, %v2097
    %vm2099 = vcmp.lt.s32.totalorder %v2098, 0
    %v2100 = vsub.s32 0, %v2098
    %v2101 = vsel %vm2099, %v2100, %v2098
    %v2102 = vclz %v2101
    %v2103 = vsub.s32 %v2102, 2
    %vm2104 = vcmp.gt.s32.totalorder 0, %v2103
    %v2105 = vsel %vm2104, 0, %v2103
    %v2106 = vsub.s32 32, %v2105
    %v2107 = vshll.u32 %v2098, %v2105
    %v2108 = vshrl.u32 %v2090, %v2106
    %v2109 = vor.u32 %v2107, %v2108
    %v2110 = vsub.s32 4294967266, %v2105
    %v2111 = vadd.s32 %v2110, 127
    %v2112 = vshll.u32 %v2111, 23
    %v2113 = vor.u32 4788187, %v2112
    %v2114 = vand.u32 2147483647, %v2113
    %v2116 = vcvt.s32.f32 %v2109
    %v2117 = vmul.f32 %v2116, %v2114
    %v2118 = vxor.u32 %v2117, 2147483648
    %v2119 = vsel %vm1998, %v2118, %v2117
    %v2120 = vsub.s32 4, %v2096
    %v2121 = vsel %vm1998, %v2120, %v2096
    %v2122 = vsel %vm1997, %v1840, %v2119
    %v2123 = vsel %vm1997, 0, %v2121
    %v2124 = vmul.f32 %v2122, %v2122
    %v2125 = vmul.f32 %v2124, -0.001358992
    %v2126 = vadd.f32 %v2125, 0.041655596
    %v2127 = vmul.f32 %v2124, %v2126
    %v2128 = vadd.f32 %v2127, -0.4999988
    %v2129 = vmul.f32 %v2124, %v2128
    %v2130 = vadd.f32 1.0, %v2129
    %v2131 = vmul.f32 %v2122, %v2122
    %v2132 = vmul.f32 %v2131, -0.00019511016
    %v2133 = vadd.f32 %v2132, 0.008332121
    %v2134 = vmul.f32 %v2131, %v2133
    %v2135 = vadd.f32 %v2134, -0.16666654
    %v2136 = vmul.f32 %v2131, %v2135
    %v2137 = vadd.f32 %v2136, 1.0
    %v2138 = vmul.f32 %v2137, %v2122
    %vm2139 = vweird.f32 %v1840
    %v2140 = vand.u32 %v2123, 3
    %vm2141 = vcmp.lt.s32.totalorder %v2140, 2
    %vm2142 = vcmp.eq.s32.totalorder %v2140, 0
    %v2143 = vxor.u32 %v2138, 2147483648
    %v2144 = vsel %vm2142, %v2130, %v2143
    %vm2145 = vcmp.eq.s32.totalorder %v2140, 2
    %v2146 = vxor.u32 %v2130, 2147483648
    %v2147 = vsel %vm2145, %v2146, %v2138
    %v2148 = vsel %vm2141, %v2144, %v2147
    %v2149 = vsel %vm2139, nan, %v2148
    %v2150 = vsub.f32 1.0, %v2149
    %v2151 = vmul.f32 %v1817, %v1839
    %2153 = vrot.lane.b32.xlu0 %v1839, 1
    %v2154 = vpop.permute.xlu0 %2153
    %v2156 = vmul.f32 %v1817, %v2154
    %2157 = vrot.lane.b32.xlu0 %v1839, 2
    %v2158 = vpop.permute.xlu0 %2157
    %v2160 = vmul.f32 %v1817, %v2158
    %v2161 = vmul.f32 %v2151, %v2151
    %v2162 = vmul.f32 %v2161, %v2150
    %v2163 = vadd.f32 %v2149, %v2162
    %2165 = vrot.lane.b32.xlu0 %v2156, 127
    %v2166 = vpop.permute.xlu0 %2165
    %v2168 = vmul.f32 %v2151, %v2166
    %v2169 = vmul.f32 %v2168, %v2150
    %2171 = vrot.lane.b32.xlu0 %v1995, 2
    %v2172 = vpop.permute.xlu0 %2171
    %v2174 = vmul.f32 %v2160, %v2172
    %2176 = vrot.lane.b32.xlu0 %v2174, 126
    %v2177 = vpop.permute.xlu0 %2176
    %v2179 = vsub.f32 %v2169, %v2177
    %2181 = vrot.lane.b32.xlu0 %v2160, 126
    %v2182 = vpop.permute.xlu0 %2181
    %v2184 = vmul.f32 %v2151, %v2182
    %v2185 = vmul.f32 %v2184, %v2150
    %2186 = vrot.lane.b32.xlu0 %v1995, 1
    %v2187 = vpop.permute.xlu0 %2186
    %v2189 = vmul.f32 %v2156, %v2187
    %2191 = vrot.lane.b32.xlu0 %v2189, 127
    %v2192 = vpop.permute.xlu0 %2191
    %v2194 = vadd.f32 %v2185, %v2192
    %v2195 = vadd.f32 %v2169, %v2177
    %v2196 = vmul.f32 %v2156, %v2156
    %2198 = vrot.lane.b32.xlu0 %v2150, 1
    %v2199 = vpop.permute.xlu0 %2198
    %v2201 = vmul.f32 %v2196, %v2199
    %2203 = vrot.lane.b32.xlu0 %v2201, 127
    %v2204 = vpop.permute.xlu0 %2203
    %v2206 = vadd.f32 %v2149, %v2204
    %2207 = vrot.lane.b32.xlu0 %v2160, 127
    %v2208 = vpop.permute.xlu0 %2207
    %v2210 = vmul.f32 %v2156, %v2208
    %v2211 = vmul.f32 %v2210, %v2199
    %v2212 = vmul.f32 %v2151, %v1995
    %2214 = vrot.lane.b32.xlu0 %v2212, 1
    %v2215 = vpop.permute.xlu0 %2214
    %v2217 = vsub.f32 %v2211, %v2215
    %v2218 = vsub.f32 %v2185, %v2192
    %v2219 = vadd.f32 %v2211, %v2215
    %v2220 = vmul.f32 %v2160, %v2160
    %2221 = vrot.lane.b32.xlu0 %v2150, 2
    %v2222 = vpop.permute.xlu0 %2221
    %v2224 = vmul.f32 %v2220, %v2222
    %2226 = vrot.lane.b32.xlu0 %v2224, 126
    %v2227 = vpop.permute.xlu0 %2226
    %v2229 = vadd.f32 %v2149, %v2227
    %2230 = vrot.lane.b32.xlu0 %v710, 1
    %v2231 = vpop.permute.xlu0 %2230
    %vm2233 = vcmp.gt.f32.partialorder %v710, %v2231
    %v2234 = vsub.f32 0.0, %v1797
    %v2235 = vsel %vm2233, 1, 0
    %2236 = vset.pattern.permute.xlu0 1
    %2237 = vperm.xlu0 %2236, %v2235
    %v2238 = vpop.permute.xlu0 %2237
    %vm2239 = vcmp.eq.s32.totalorder %v2238, 1
    %v2240 = vsel %vm2239, %v2234, %v1797
    %2242 = vset.pattern.permute.xlu0 0
    %2243 = vperm.xlu0 %2242, %v2163
    %v2244 = vpop.permute.xlu0 %2243
    %v2246 = vmul.f32 %v1757, %v2244
    %2248 = vset.pattern.permute.xlu0 0
    %2249 = vperm.xlu0 %2248, %v2195
    %v2250 = vpop.permute.xlu0 %2249
    %v2252 = vmul.f32 %v1777, %v2250
    %v2253 = vadd.f32 %v2246, %v2252
    %2255 = vset.pattern.permute.xlu0 0
    %2256 = vperm.xlu0 %2255, %v2218
    %v2257 = vpop.permute.xlu0 %2256
    %v2259 = vmul.f32 %v2240, %v2257
    %v2260 = vadd.f32 %v2253, %v2259
    %2262 = vset.pattern.permute.xlu0 0
    %2263 = vperm.xlu0 %2262, %v2179
    %v2264 = vpop.permute.xlu0 %2263
    %v2266 = vmul.f32 %v1757, %v2264
    %2268 = vset.pattern.permute.xlu0 0
    %2269 = vperm.xlu0 %2268, %v2206
    %v2270 = vpop.permute.xlu0 %2269
    %v2272 = vmul.f32 %v1777, %v2270
    %v2273 = vadd.f32 %v2266, %v2272
    %2275 = vset.pattern.permute.xlu0 1
    %2276 = vperm.xlu0 %2275, %v2219
    %v2277 = vpop.permute.xlu0 %2276
    %v2279 = vmul.f32 %v2240, %v2277
    %v2280 = vadd.f32 %v2273, %v2279
    %2282 = vset.pattern.permute.xlu0 0
    %2283 = vperm.xlu0 %2282, %v2194
    %v2284 = vpop.permute.xlu0 %2283
    %v2286 = vmul.f32 %v1757, %v2284
    %2288 = vset.pattern.permute.xlu0 1
    %2289 = vperm.xlu0 %2288, %v2217
    %v2290 = vpop.permute.xlu0 %2289
    %v2292 = vmul.f32 %v1777, %v2290
    %v2293 = vadd.f32 %v2286, %v2292
    %2295 = vset.pattern.permute.xlu0 0
    %2296 = vperm.xlu0 %2295, %v2229
    %v2297 = vpop.permute.xlu0 %2296
    %v2299 = vmul.f32 %v2240, %v2297
    %v2300 = vadd.f32 %v2293, %v2299
    %2301 = vrot.lane.b32.xlu0 %v2179, 1
    %v2302 = vpop.permute.xlu0 %2301
    %2304 = vrot.lane.b32.xlu0 %v2194, 2
    %v2305 = vpop.permute.xlu0 %2304
    %2307 = vrot.lane.b32.xlu0 %v2195, 3
    %v2308 = vpop.permute.xlu0 %2307
    %2310 = vrot.lane.b32.xlu0 %v2206, 4
    %v2311 = vpop.permute.xlu0 %2310
    %2313 = vrot.lane.b32.xlu0 %v2217, 4
    %v2314 = vpop.permute.xlu0 %2313
    %2316 = vrot.lane.b32.xlu0 %v2218, 6
    %v2317 = vpop.permute.xlu0 %2316
    %2319 = vrot.lane.b32.xlu0 %v2219, 6
    %v2320 = vpop.permute.xlu0 %2319
    %2322 = vrot.lane.b32.xlu0 %v2229, 8
    %v2323 = vpop.permute.xlu0 %2322
    %vm2325 = vcmask 7168
    %v2326 = vsel %vm2325, %v2163, %v2302
    %v2327 = vsel %vm712, %v2326, %v2305
    %vm2328 = vcmask 23552
    %v2329 = vsel %vm2328, %v2327, %v2308
    %vm2330 = vcmask 31744
    %v2331 = vsel %vm2330, %v2329, %v2311
    %vm2332 = vcmask 39936
    %v2333 = vsel %vm2332, %v2331, %v2314
    %vm2334 = vcmask 48128
    %v2335 = vsel %vm2334, %v2333, %v2317
    %vm2336 = vcmask 56320
    %v2337 = vsel %vm2336, %v2335, %v2320
    %vm2338 = vcmask 64512
    %v2339 = vsel %vm2338, %v2337, %v2323
    %vm2340 = vcmask 72704
    %v2341 = vsel %vm2340, %v2339, 0.0
    %v2346 = vrot.slane %v2280, 6
    %v2347 = vrot.slane %v2300, 4
    %v2348 = vrot.slane %v2341, 2
    %v2349 = vsel %vm716, %v2260, %v2346
    %vm2350 = vcmask 1045508
    %v2351 = vsel %vm2350, %v2347, %v2348
    %vm2352 = vcmask 1043456
    %v2353 = vsel %vm2352, %v2349, %v2351
    %2355 = vst [vmem:[#allocation2] sm:$0xff] %v2353
    // Predicated region
    $region30: #{tpu_custom_call.1} parent=1 // pred_check
      _
    $region31: #{tpu_custom_call.1} parent=1 // pred_check_branch
      %2357 = sbr.rel (0) target = $region33
    $region32: #{tpu_custom_call.1} parent=1 // pred_region
      %2359 = vsyncadd [#allocation3], 0
      %s2361 = sshll.u32 [#allocation2], 4
      %s2362 = int_to_ptr.vmem [resolvable:$true] %s2361
      %s2363 = sshll.u32 %s7, 4
      %s2364 = int_to_ptr.hbm [resolvable:$true] %s2363
      %2366 = dma.vmem_to_hbm [thread:$0]  %s2362, 128, %s2364, [#allocation3]
    $region33: #{tpu_custom_call.1} parent=1 // pred_fallthru
      _
    // Predicated region
    $region34: #{tpu_custom_call.1} parent=1 // pred_check
      _
    $region35: #{tpu_custom_call.1} parent=1 // pred_check_branch
      %2368 = sbr.rel (0) target = $region37
    $region36: #{tpu_custom_call.1} parent=1 // pred_region
      %2370 = dma.done [#allocation3], 128
    $region37: #{tpu_custom_call.1} parent=1 // pred_fallthru
      _
    %2371 = vsyncpa [#allocation3], 1

</llo_original>
